<compile_context>
chip_gen: v7x
topology: tpu7x:2x2x1
jax: 0.10.0
libtpu: 0.0.40
codegen_flags: <defaults>
</compile_context>

<pallas_src>
import math

import jax
import jax.numpy as jnp
from jax import lax
from jax.experimental import pallas as pl
from jax.experimental.pallas import tpu as pltpu

EPS = 1e-5  # PyTorch BatchNorm1d default eps


def _resblock_kernel(x_ref, w1_ref, g1_ref, b1_ref, w2_ref, g2_ref, b2_ref,
                     o_ref, pad_ref):
    """Whole ResBlock forward for one (small) batch, everything resident in VMEM.

    x_ref  : (N, L, C)        input activations (NLC layout)
    w*_ref : (K*C, C)         im2col conv weights, row index = tap*C + cin
    g*/b*  : (1, C)           BN gamma / beta
    o_ref  : (N, L, C)        output
    pad_ref: (N, L + 2P, C)   f32 zero-padded line buffer, reused for both convs
    """
    N, L, C = x_ref.shape
    P = (pad_ref.shape[1] - L) // 2
    K = w1_ref.shape[0] // C

    # Zero only the halo rows, once.  The interior is fully overwritten below.
    pad_ref[:, :P, :] = jnp.zeros((N, P, C), jnp.float32)
    pad_ref[:, P + L:, :] = jnp.zeros((N, P, C), jnp.float32)

    def conv(w_ref):
        # im2col: concat the K shifted windows along channels -> one MXU dot.
        xs = jnp.concatenate([pad_ref[:, k:k + L, :] for k in range(K)],
                             axis=-1)                                 # (N, L, K*C)
        return jnp.dot(xs.reshape(N * L, K * C), w_ref[...],
                       preferred_element_type=jnp.float32)            # (N*L, C)

    def batchnorm(y, g_ref, b_ref):
        # Training-mode batch stats (biased variance), fused scale/shift.
        inv_n = 1.0 / (N * L)
        mu = jnp.sum(y, axis=0, keepdims=True) * inv_n                # (1, C)
        ms = jnp.sum(y * y, axis=0, keepdims=True) * inv_n            # (1, C)
        var = ms - mu * mu
        scale = g_ref[...] * lax.rsqrt(var + EPS)                     # (1, C)
        shift = b_ref[...] - mu * scale                               # (1, C)
        return y * scale + shift

    # Conv1 -> BN1 -> ReLU
    pad_ref[:, P:P + L, :] = x_ref[...].astype(jnp.float32)
    h = jnp.maximum(batchnorm(conv(w1_ref), g1_ref, b1_ref), 0.0)     # (N*L, C)

    # Conv2 -> BN2
    pad_ref[:, P:P + L, :] = h.reshape(N, L, C)
    h = batchnorm(conv(w2_ref), g2_ref, b2_ref)                       # (N*L, C)

    # Residual add (re-read x from VMEM; keeps its live range short) + ReLU.
    o_ref[...] = jnp.maximum(
        x_ref[...].astype(jnp.float32) + h.reshape(N, L, C), 0.0
    ).astype(o_ref.dtype)


def resblock_pallas(x_nlc, w1, g1, b1, w2, g2, b2, padding):
    """x_nlc: (N, L, C); w1/w2: (K*C, C); g/b: (1, C)."""
    N, L, C = x_nlc.shape
    KC = w1.shape[0]
    K = KC // C
    P = padding

    full3 = lambda shape: pl.BlockSpec(shape, lambda i: (0, 0, 0))
    full2 = lambda shape: pl.BlockSpec(shape, lambda i: (0, 0))

    grid_spec = pltpu.PrefetchScalarGridSpec(
        num_scalar_prefetch=0,
        grid=(1,),
        in_specs=[
            full3((N, L, C)),   # x
            full2((KC, C)),     # w1 (im2col)
            full2((1, C)),      # gamma1
            full2((1, C)),      # beta1
            full2((KC, C)),     # w2 (im2col)
            full2((1, C)),      # gamma2
            full2((1, C)),      # beta2
        ],
        out_specs=full3((N, L, C)),
        scratch_shapes=[pltpu.VMEM((N, L + 2 * P, C), jnp.float32)],
    )

    cost = pl.CostEstimate(
        flops=2 * 2 * K * N * L * C * C,                 # 2 convs, 2 flops/MAC
        transcendentals=2 * C,                           # 2 rsqrt per channel
        bytes_accessed=4 * (2 * N * L * C + 2 * KC * C + 4 * C),
    )

    return pl.pallas_call(
        _resblock_kernel,
        out_shape=jax.ShapeDtypeStruct((N, L, C), x_nlc.dtype),
        grid_spec=grid_spec,
        cost_estimate=cost,
        compiler_params=pltpu.CompilerParams(
            dimension_semantics=("arbitrary",)),
    )(x_nlc, w1, g1, b1, w2, g2, b2)


def ref_forward(x_ncl, w1_pt, g1, b1, w2_pt, g2, b2, padding):
    """Pure-JAX reference matching the PyTorch module (training-mode BN)."""
    def conv1d(x, w):  # x: (N, C, L), w: (Cout, Cin, K)
        return jax.lax.conv_general_dilated(
            x, w, window_strides=(1,), padding=[(padding, padding)],
            dimension_numbers=("NCH", "OIH", "NCH"))

    def bn(y, g, b):
        mu = jnp.mean(y, axis=(0, 2), keepdims=True)
        var = jnp.mean((y - mu) ** 2, axis=(0, 2), keepdims=True)
        return ((y - mu) / jnp.sqrt(var + EPS)) * g.reshape(1, -1, 1) \
            + b.reshape(1, -1, 1)

    h = jax.nn.relu(bn(conv1d(x_ncl, w1_pt), g1, b1))
    h = bn(conv1d(h, w2_pt), g2, b2)
    return jax.nn.relu(x_ncl + h)


if __name__ == "__main__":
    # Small shapes consistent with the module: ResBlock(num_filters=128, k=3, pad=1)
    N, C, L = 2, 128, 64
    K, P = 3, 1

    key = jax.random.PRNGKey(0)
    kx, kw1, kw2, kg1, kg2 = jax.random.split(key, 5)

    # Deterministic init mirroring init_weights():
    #  - Conv1d: kaiming_normal_(a=0, fan_in) -> std = sqrt(2 / (Cin * K))
    #  - BN: weight ~ N(0, sqrt(2/9/64)) clamped to [-0.025, 0.025], bias = 0
    conv_std = math.sqrt(2.0 / (C * K))
    w1_pt = jax.random.normal(kw1, (C, C, K), jnp.float32) * conv_std  # (Cout,Cin,K)
    w2_pt = jax.random.normal(kw2, (C, C, K), jnp.float32) * conv_std
    bn_std = math.sqrt(2.0 / 9.0 / 64.0)
    g1 = jnp.clip(jax.random.normal(kg1, (C,), jnp.float32) * bn_std, -0.025, 0.025)
    g2 = jnp.clip(jax.random.normal(kg2, (C,), jnp.float32) * bn_std, -0.025, 0.025)
    b1 = jnp.zeros((C,), jnp.float32)
    b2 = jnp.zeros((C,), jnp.float32)

    # Input in PyTorch NCL layout.
    x_ncl = jax.random.normal(kx, (N, C, L), jnp.float32)

    # Glue: NCL -> NLC; conv weights (Cout,Cin,K) -> (K,Cin,Cout) -> (K*Cin,Cout).
    x_nlc = jnp.transpose(x_ncl, (0, 2, 1))
    w1 = jnp.transpose(w1_pt, (2, 1, 0)).reshape(K * C, C)
    w2 = jnp.transpose(w2_pt, (2, 1, 0)).reshape(K * C, C)

    out_nlc = resblock_pallas(
        x_nlc, w1, g1.reshape(1, C), b1.reshape(1, C),
        w2, g2.reshape(1, C), b2.reshape(1, C), P)
    out_nlc = jax.block_until_ready(out_nlc)
    out_ncl = jnp.transpose(out_nlc, (0, 2, 1))

    ref = ref_forward(x_ncl, w1_pt, g1, b1, w2_pt, g2, b2, P)
    max_err = float(jnp.max(jnp.abs(out_ncl - ref)))
    assert jnp.allclose(out_ncl, ref, atol=1e-4, rtol=1e-4), max_err
    print("KERNEL_OK")
</pallas_src>

<mosaic_0001>
module attributes {stable_mosaic.version = 11 : i64} {
  func.func @_resblock_kernel(%arg0: i32, %arg1: memref<2x64x128xf32, #tpu.memory_space<vmem>>, %arg2: memref<384x128xf32, #tpu.memory_space<vmem>>, %arg3: memref<1x128xf32, #tpu.memory_space<vmem>>, %arg4: memref<1x128xf32, #tpu.memory_space<vmem>>, %arg5: memref<384x128xf32, #tpu.memory_space<vmem>>, %arg6: memref<1x128xf32, #tpu.memory_space<vmem>>, %arg7: memref<1x128xf32, #tpu.memory_space<vmem>>, %arg8: memref<2x64x128xf32, #tpu.memory_space<vmem>>, %arg9: memref<2x66x128xf32, #tpu.memory_space<vmem>>) attributes {dimension_semantics = [#tpu.dimension_semantics<arbitrary>], iteration_bounds = array<i64: 1>, scalar_prefetch = 0 : i64, scratch_operands = 1 : i64, tpu.core_type = #tpu.core_type<tc>, window_params = [{pipeline_mode = #tpu.pipeline_mode<synchronous>, transform_indices = @transform_0, window_bounds = array<i64: 2, 64, 128>}, {pipeline_mode = #tpu.pipeline_mode<synchronous>, transform_indices = @transform_1, window_bounds = array<i64: 384, 128>}, {pipeline_mode = #tpu.pipeline_mode<synchronous>, transform_indices = @transform_2, window_bounds = array<i64: 1, 128>}, {pipeline_mode = #tpu.pipeline_mode<synchronous>, transform_indices = @transform_3, window_bounds = array<i64: 1, 128>}, {pipeline_mode = #tpu.pipeline_mode<synchronous>, transform_indices = @transform_4, window_bounds = array<i64: 384, 128>}, {pipeline_mode = #tpu.pipeline_mode<synchronous>, transform_indices = @transform_5, window_bounds = array<i64: 1, 128>}, {pipeline_mode = #tpu.pipeline_mode<synchronous>, transform_indices = @transform_6, window_bounds = array<i64: 1, 128>}, {pipeline_mode = #tpu.pipeline_mode<synchronous>, transform_indices = @transform_7, window_bounds = array<i64: 2, 64, 128>}]} {
    %cst = arith.constant 0.000000e+00 : f32
    %0 = vector.broadcast %cst : f32 to vector<2x1x128xf32>
    %c0 = arith.constant 0 : index
    %c0_0 = arith.constant 0 : index
    %c0_1 = arith.constant 0 : index
    %1 = vector.load %arg9[%c0, %c0_0, %c0_1] : memref<2x66x128xf32, #tpu.memory_space<vmem>>, vector<2x1x128xf32>
    tpu.vector_store %arg9[%c0, %c0_0, %c0_1], %0 {strides = array<i32>} : memref<2x66x128xf32, #tpu.memory_space<vmem>>, vector<2x1x128xf32>,
    %cst_2 = arith.constant 0.000000e+00 : f32
    %2 = vector.broadcast %cst_2 : f32 to vector<2x1x128xf32>
    %c0_3 = arith.constant 0 : index
    %c65 = arith.constant 65 : index
    %c0_4 = arith.constant 0 : index
    %3 = vector.load %arg9[%c0_3, %c65, %c0_4] : memref<2x66x128xf32, #tpu.memory_space<vmem>>, vector<2x1x128xf32>
    tpu.vector_store %arg9[%c0_3, %c65, %c0_4], %2 {strides = array<i32>} : memref<2x66x128xf32, #tpu.memory_space<vmem>>, vector<2x1x128xf32>,
    %c0_5 = arith.constant 0 : index
    %c0_6 = arith.constant 0 : index
    %c0_7 = arith.constant 0 : index
    %4 = vector.load %arg1[%c0_5, %c0_6, %c0_7] : memref<2x64x128xf32, #tpu.memory_space<vmem>>, vector<2x64x128xf32>
    %c0_8 = arith.constant 0 : index
    %c1 = arith.constant 1 : index
    %c0_9 = arith.constant 0 : index
    %5 = vector.load %arg9[%c0_8, %c1, %c0_9] : memref<2x66x128xf32, #tpu.memory_space<vmem>>, vector<2x64x128xf32>
    tpu.vector_store %arg9[%c0_8, %c1, %c0_9], %4 {strides = array<i32>} : memref<2x66x128xf32, #tpu.memory_space<vmem>>, vector<2x64x128xf32>,
    %c0_10 = arith.constant 0 : index
    %c0_11 = arith.constant 0 : index
    %c0_12 = arith.constant 0 : index
    %6 = vector.load %arg9[%c0_10, %c0_11, %c0_12] : memref<2x66x128xf32, #tpu.memory_space<vmem>>, vector<2x64x128xf32>
    %c0_13 = arith.constant 0 : index
    %c1_14 = arith.constant 1 : index
    %c0_15 = arith.constant 0 : index
    %7 = vector.load %arg9[%c0_13, %c1_14, %c0_15] : memref<2x66x128xf32, #tpu.memory_space<vmem>>, vector<2x64x128xf32>
    %c0_16 = arith.constant 0 : index
    %c2 = arith.constant 2 : index
    %c0_17 = arith.constant 0 : index
    %8 = vector.load %arg9[%c0_16, %c2, %c0_17] : memref<2x66x128xf32, #tpu.memory_space<vmem>>, vector<2x64x128xf32>
    %9 = tpu.concatenate %6, %7, %8 in 2 : vector<2x64x128xf32>, vector<2x64x128xf32>, vector<2x64x128xf32> -> vector<2x64x384xf32>
    %10 = vector.shape_cast %9 : vector<2x64x384xf32> to vector<128x384xf32>
    %c0_18 = arith.constant 0 : index
    %c0_19 = arith.constant 0 : index
    %11 = vector.load %arg2[%c0_18, %c0_19] : memref<384x128xf32, #tpu.memory_space<vmem>>, vector<384x128xf32>
    %cst_20 = arith.constant dense<0.000000e+00> : vector<128x128xf32>
    %12 = tpu.matmul %10, %11, %cst_20 {dimension_numbers = #tpu.dot_dimension_numbers<[1], [0], [0], [1], [0, 0, 1, 1], [], []>} : vector<128x384xf32>, vector<384x128xf32>, vector<128x128xf32> -> vector<128x128xf32>
    %cst_21 = arith.constant dense<0.000000e+00> : vector<128xf32>
    %13 = vector.multi_reduction <add>, %12, %cst_21 [0] : vector<128x128xf32> to vector<128xf32>
    %14 = vector.shape_cast %13 : vector<128xf32> to vector<1x128xf32>
    %cst_22 = arith.constant 7.812500e-03 : f32
    %15 = vector.broadcast %cst_22 : f32 to vector<1x128xf32>
    %16 = arith.mulf %14, %15 : vector<1x128xf32>
    %17 = arith.mulf %12, %12 : vector<128x128xf32>
    %cst_23 = arith.constant dense<0.000000e+00> : vector<128xf32>
    %18 = vector.multi_reduction <add>, %17, %cst_23 [0] : vector<128x128xf32> to vector<128xf32>
    %19 = vector.shape_cast %18 : vector<128xf32> to vector<1x128xf32>
    %cst_24 = arith.constant 7.812500e-03 : f32
    %20 = vector.broadcast %cst_24 : f32 to vector<1x128xf32>
    %21 = arith.mulf %19, %20 : vector<1x128xf32>
    %22 = arith.mulf %16, %16 : vector<1x128xf32>
    %23 = arith.subf %21, %22 : vector<1x128xf32>
    %c0_25 = arith.constant 0 : index
    %c0_26 = arith.constant 0 : index
    %24 = vector.load %arg3[%c0_25, %c0_26] : memref<1x128xf32, #tpu.memory_space<vmem>>, vector<1x128xf32>
    %cst_27 = arith.constant 9.99999974E-6 : f32
    %25 = vector.broadcast %cst_27 : f32 to vector<1x128xf32>
    %26 = arith.addf %23, %25 : vector<1x128xf32>
    %27 = math.rsqrt %26 : vector<1x128xf32>
    %28 = arith.mulf %24, %27 : vector<1x128xf32>
    %c0_28 = arith.constant 0 : index
    %c0_29 = arith.constant 0 : index
    %29 = vector.load %arg4[%c0_28, %c0_29] : memref<1x128xf32, #tpu.memory_space<vmem>>, vector<1x128xf32>
    %30 = arith.mulf %16, %28 : vector<1x128xf32>
    %31 = arith.subf %29, %30 : vector<1x128xf32>
    %32 = vector.broadcast %28 : vector<1x128xf32> to vector<128x128xf32>
    %33 = arith.mulf %12, %32 : vector<128x128xf32>
    %34 = vector.broadcast %31 : vector<1x128xf32> to vector<128x128xf32>
    %35 = arith.addf %33, %34 : vector<128x128xf32>
    %cst_30 = arith.constant 0.000000e+00 : f32
    %36 = vector.broadcast %cst_30 : f32 to vector<128x128xf32>
    %37 = arith.maximumf %35, %36 : vector<128x128xf32>
    %38 = vector.shape_cast %37 : vector<128x128xf32> to vector<2x64x128xf32>
    %c0_31 = arith.constant 0 : index
    %c1_32 = arith.constant 1 : index
    %c0_33 = arith.constant 0 : index
    %39 = vector.load %arg9[%c0_31, %c1_32, %c0_33] : memref<2x66x128xf32, #tpu.memory_space<vmem>>, vector<2x64x128xf32>
    tpu.vector_store %arg9[%c0_31, %c1_32, %c0_33], %38 {strides = array<i32>} : memref<2x66x128xf32, #tpu.memory_space<vmem>>, vector<2x64x128xf32>,
    %c0_34 = arith.constant 0 : index
    %c0_35 = arith.constant 0 : index
    %c0_36 = arith.constant 0 : index
    %40 = vector.load %arg9[%c0_34, %c0_35, %c0_36] : memref<2x66x128xf32, #tpu.memory_space<vmem>>, vector<2x64x128xf32>
    %c0_37 = arith.constant 0 : index
    %c1_38 = arith.constant 1 : index
    %c0_39 = arith.constant 0 : index
    %41 = vector.load %arg9[%c0_37, %c1_38, %c0_39] : memref<2x66x128xf32, #tpu.memory_space<vmem>>, vector<2x64x128xf32>
    %c0_40 = arith.constant 0 : index
    %c2_41 = arith.constant 2 : index
    %c0_42 = arith.constant 0 : index
    %42 = vector.load %arg9[%c0_40, %c2_41, %c0_42] : memref<2x66x128xf32, #tpu.memory_space<vmem>>, vector<2x64x128xf32>
    %43 = tpu.concatenate %40, %41, %42 in 2 : vector<2x64x128xf32>, vector<2x64x128xf32>, vector<2x64x128xf32> -> vector<2x64x384xf32>
    %44 = vector.shape_cast %43 : vector<2x64x384xf32> to vector<128x384xf32>
    %c0_43 = arith.constant 0 : index
    %c0_44 = arith.constant 0 : index
    %45 = vector.load %arg5[%c0_43, %c0_44] : memref<384x128xf32, #tpu.memory_space<vmem>>, vector<384x128xf32>
    %cst_45 = arith.constant dense<0.000000e+00> : vector<128x128xf32>
    %46 = tpu.matmul %44, %45, %cst_45 {dimension_numbers = #tpu.dot_dimension_numbers<[1], [0], [0], [1], [0, 0, 1, 1], [], []>} : vector<128x384xf32>, vector<384x128xf32>, vector<128x128xf32> -> vector<128x128xf32>
    %cst_46 = arith.constant dense<0.000000e+00> : vector<128xf32>
    %47 = vector.multi_reduction <add>, %46, %cst_46 [0] : vector<128x128xf32> to vector<128xf32>
    %48 = vector.shape_cast %47 : vector<128xf32> to vector<1x128xf32>
    %cst_47 = arith.constant 7.812500e-03 : f32
    %49 = vector.broadcast %cst_47 : f32 to vector<1x128xf32>
    %50 = arith.mulf %48, %49 : vector<1x128xf32>
    %51 = arith.mulf %46, %46 : vector<128x128xf32>
    %cst_48 = arith.constant dense<0.000000e+00> : vector<128xf32>
    %52 = vector.multi_reduction <add>, %51, %cst_48 [0] : vector<128x128xf32> to vector<128xf32>
    %53 = vector.shape_cast %52 : vector<128xf32> to vector<1x128xf32>
    %cst_49 = arith.constant 7.812500e-03 : f32
    %54 = vector.broadcast %cst_49 : f32 to vector<1x128xf32>
    %55 = arith.mulf %53, %54 : vector<1x128xf32>
    %56 = arith.mulf %50, %50 : vector<1x128xf32>
    %57 = arith.subf %55, %56 : vector<1x128xf32>
    %c0_50 = arith.constant 0 : index
    %c0_51 = arith.constant 0 : index
    %58 = vector.load %arg6[%c0_50, %c0_51] : memref<1x128xf32, #tpu.memory_space<vmem>>, vector<1x128xf32>
    %cst_52 = arith.constant 9.99999974E-6 : f32
    %59 = vector.broadcast %cst_52 : f32 to vector<1x128xf32>
    %60 = arith.addf %57, %59 : vector<1x128xf32>
    %61 = math.rsqrt %60 : vector<1x128xf32>
    %62 = arith.mulf %58, %61 : vector<1x128xf32>
    %c0_53 = arith.constant 0 : index
    %c0_54 = arith.constant 0 : index
    %63 = vector.load %arg7[%c0_53, %c0_54] : memref<1x128xf32, #tpu.memory_space<vmem>>, vector<1x128xf32>
    %64 = arith.mulf %50, %62 : vector<1x128xf32>
    %65 = arith.subf %63, %64 : vector<1x128xf32>
    %66 = vector.broadcast %62 : vector<1x128xf32> to vector<128x128xf32>
    %67 = arith.mulf %46, %66 : vector<128x128xf32>
    %68 = vector.broadcast %65 : vector<1x128xf32> to vector<128x128xf32>
    %69 = arith.addf %67, %68 : vector<128x128xf32>
    %c0_55 = arith.constant 0 : index
    %c0_56 = arith.constant 0 : index
    %c0_57 = arith.constant 0 : index
    %70 = vector.load %arg1[%c0_55, %c0_56, %c0_57] : memref<2x64x128xf32, #tpu.memory_space<vmem>>, vector<2x64x128xf32>
    %71 = vector.shape_cast %69 : vector<128x128xf32> to vector<2x64x128xf32>
    %72 = arith.addf %70, %71 : vector<2x64x128xf32>
    %cst_58 = arith.constant 0.000000e+00 : f32
    %73 = vector.broadcast %cst_58 : f32 to vector<2x64x128xf32>
    %74 = arith.maximumf %72, %73 : vector<2x64x128xf32>
    %c0_59 = arith.constant 0 : index
    %c0_60 = arith.constant 0 : index
    %c0_61 = arith.constant 0 : index
    %75 = vector.load %arg8[%c0_59, %c0_60, %c0_61] : memref<2x64x128xf32, #tpu.memory_space<vmem>>, vector<2x64x128xf32>
    tpu.vector_store %arg8[%c0_59, %c0_60, %c0_61], %74 {strides = array<i32>} : memref<2x64x128xf32, #tpu.memory_space<vmem>>, vector<2x64x128xf32>,
    return
  }
  func.func @transform_0(%arg0: i32) -> (i32, i32, i32) {
    %c0_i32 = arith.constant 0 : i32
    %c0_i32_0 = arith.constant 0 : i32
    %c0_i32_1 = arith.constant 0 : i32
    %c0_i32_2 = arith.constant 0 : i32
    return %c0_i32, %c0_i32_0, %c0_i32_1 : i32, i32, i32
  }
  func.func @transform_1(%arg0: i32) -> (i32, i32) {
    %c0_i32 = arith.constant 0 : i32
    %c0_i32_0 = arith.constant 0 : i32
    %c0_i32_1 = arith.constant 0 : i32
    return %c0_i32, %c0_i32_0 : i32, i32
  }
  func.func @transform_2(%arg0: i32) -> (i32, i32) {
    %c0_i32 = arith.constant 0 : i32
    %c0_i32_0 = arith.constant 0 : i32
    %c0_i32_1 = arith.constant 0 : i32
    return %c0_i32, %c0_i32_0 : i32, i32
  }
  func.func @transform_3(%arg0: i32) -> (i32, i32) {
    %c0_i32 = arith.constant 0 : i32
    %c0_i32_0 = arith.constant 0 : i32
    %c0_i32_1 = arith.constant 0 : i32
    return %c0_i32, %c0_i32_0 : i32, i32
  }
  func.func @transform_4(%arg0: i32) -> (i32, i32) {
    %c0_i32 = arith.constant 0 : i32
    %c0_i32_0 = arith.constant 0 : i32
    %c0_i32_1 = arith.constant 0 : i32
    return %c0_i32, %c0_i32_0 : i32, i32
  }
  func.func @transform_5(%arg0: i32) -> (i32, i32) {
    %c0_i32 = arith.constant 0 : i32
    %c0_i32_0 = arith.constant 0 : i32
    %c0_i32_1 = arith.constant 0 : i32
    return %c0_i32, %c0_i32_0 : i32, i32
  }
  func.func @transform_6(%arg0: i32) -> (i32, i32) {
    %c0_i32 = arith.constant 0 : i32
    %c0_i32_0 = arith.constant 0 : i32
    %c0_i32_1 = arith.constant 0 : i32
    return %c0_i32, %c0_i32_0 : i32, i32
  }
  func.func @transform_7(%arg0: i32) -> (i32, i32, i32) {
    %c0_i32 = arith.constant 0 : i32
    %c0_i32_0 = arith.constant 0 : i32
    %c0_i32_1 = arith.constant 0 : i32
    %c0_i32_2 = arith.constant 0 : i32
    return %c0_i32, %c0_i32_0, %c0_i32_1 : i32, i32, i32
  }
}

</mosaic_0001>

<llo_original>
// kernel: tpu_custom_call.1
$region0: #{tpu_custom_call.1}
  #allocation0 [shape = 'u32[]', space=smem, size = 0x4, offset = 0x4, fixed_abs, tag = 'smem constant byte address 0x4 - core index']
  #allocation1 [shape = 'u32[144,128]{1,0:T(1,128)}', space=vmem, size = 0x12000, scoped, tag = 'internal scratch']
  #allocation2 [shape = 'f32[2,66,128]{2,1,0:T(8,128)}', space=vmem, size = 0x12000, scoped, tag = 'scratch operand']
  %s0 = inlined_call_operand.hbm [shape: f32[2,64,128], index: 0, kind: input, shape index: {}]
  %s1 = inlined_call_operand.hbm [shape: f32[384,128], index: 1, kind: input, shape index: {}]
  %s2 = inlined_call_operand.vmem [shape: f32[1,128], index: 2, kind: input, shape index: {}]
  %s3 = inlined_call_operand.vmem [shape: f32[1,128], index: 3, kind: input, shape index: {}]
  %s4 = inlined_call_operand.hbm [shape: f32[384,128], index: 4, kind: input, shape index: {}]
  %s5 = inlined_call_operand.vmem [shape: f32[1,128], index: 5, kind: input, shape index: {}]
  %s6 = inlined_call_operand.vmem [shape: f32[1,128], index: 6, kind: input, shape index: {}]
  %s7 = inlined_call_operand.hbm [shape: f32[2,64,128], index: 7, kind: output, shape index: {}]
  %s8 = sld [smem:[#allocation0]]
  $region50: #{tpu_custom_call.1} parent=0
    _
  %s10 = ssub.s32 1, %s8
  %s11 = scalar_select 0, %s10, %s8
  $region1: #{tpu_custom_call.1} parent=0
    #allocation3 [shape = 'u8[65536]{0}', space=vmem, size = 0x10000, scoped, tag = 'input window, operand 0, single buffered']
    #allocation4 [shape = 's32[1]{0}', space=sflag, size = 0x4, scoped, tag = 'scoped memory for tpu_custom_call.1']
    #allocation5 [shape = 's32[1]{0}', space=sflag, size = 0x4, scoped, tag = 'scoped memory for tpu_custom_call.1']
    #allocation6 [shape = 'u8[196608]{0}', space=vmem, size = 0x30000, scoped, tag = 'input window, operand 1, single buffered']
    #allocation7 [shape = 's32[1]{0}', space=sflag, size = 0x4, scoped, tag = 'scoped memory for tpu_custom_call.1']
    #allocation8 [shape = 'u8[196608]{0}', space=vmem, size = 0x30000, scoped, tag = 'input window, operand 4, single buffered']
    #allocation9 [shape = 'u8[65536]{0}', space=vmem, size = 0x10000, scoped, tag = 'output window, operand 0, single buffered']
    %12 = vsyncpa [#allocation4], 0
    %13 = vsyncpa [#allocation7], 0
    %14 = vsyncpa [#allocation5], 0
    // Predicated region
    $region2: #{tpu_custom_call.1} parent=1 // pred_check
      _
    $region3: #{tpu_custom_call.1} parent=1 // pred_check_branch
      %16 = sbr.rel (0) target = $region5
    $region4: #{tpu_custom_call.1} parent=1 // pred_region
      %s18 = ssub.s32 2048, 2048
      %19 = vsyncadd [#allocation4], %s18
      %s20 = sshll.u32 [#allocation3], 4
      %s21 = int_to_ptr.vmem [resolvable:$true] %s20
      %26 = dma.hbm_to_vmem [thread:$0]  %s0, 2048, %s21, [#allocation4], 128, 128, 8
    $region5: #{tpu_custom_call.1} parent=1 // pred_fallthru
      _
    // Predicated region
    $region6: #{tpu_custom_call.1} parent=1 // pred_check
      _
    $region7: #{tpu_custom_call.1} parent=1 // pred_check_branch
      %28 = sbr.rel (0) target = $region9
    $region8: #{tpu_custom_call.1} parent=1 // pred_region
      %s30 = ssub.s32 6144, 6144
      %31 = vsyncadd [#allocation7], %s30
      %s32 = sshll.u32 [#allocation6], 4
      %s33 = int_to_ptr.vmem [resolvable:$true] %s32
      %38 = dma.hbm_to_vmem [thread:$0]  %s1, 6144, %s33, [#allocation7], 128, 128, 8
    $region9: #{tpu_custom_call.1} parent=1 // pred_fallthru
      _
    // Predicated region
    $region10: #{tpu_custom_call.1} parent=1 // pred_check
      _
    $region11: #{tpu_custom_call.1} parent=1 // pred_check_branch
      %40 = sbr.rel (0) target = $region13
    $region12: #{tpu_custom_call.1} parent=1 // pred_region
      _
    $region13: #{tpu_custom_call.1} parent=1 // pred_fallthru
      _
    // Predicated region
    $region14: #{tpu_custom_call.1} parent=1 // pred_check
      _
    $region15: #{tpu_custom_call.1} parent=1 // pred_check_branch
      %42 = sbr.rel (0) target = $region17
    $region16: #{tpu_custom_call.1} parent=1 // pred_region
      _
    $region17: #{tpu_custom_call.1} parent=1 // pred_fallthru
      _
    // Predicated region
    $region18: #{tpu_custom_call.1} parent=1 // pred_check
      _
    $region19: #{tpu_custom_call.1} parent=1 // pred_check_branch
      %44 = sbr.rel (0) target = $region21
    $region20: #{tpu_custom_call.1} parent=1 // pred_region
      %s46 = ssub.s32 6144, 6144
      %47 = vsyncadd [#allocation7], %s46
      %s48 = sshll.u32 [#allocation8], 4
      %s49 = int_to_ptr.vmem [resolvable:$true] %s48
      %54 = dma.hbm_to_vmem [thread:$0]  %s4, 6144, %s49, [#allocation7], 128, 128, 8
    $region21: #{tpu_custom_call.1} parent=1 // pred_fallthru
      _
    // Predicated region
    $region22: #{tpu_custom_call.1} parent=1 // pred_check
      _
    $region23: #{tpu_custom_call.1} parent=1 // pred_check_branch
      %56 = sbr.rel (0) target = $region25
    $region24: #{tpu_custom_call.1} parent=1 // pred_region
      _
    $region25: #{tpu_custom_call.1} parent=1 // pred_fallthru
      _
    // Predicated region
    $region26: #{tpu_custom_call.1} parent=1 // pred_check
      _
    $region27: #{tpu_custom_call.1} parent=1 // pred_check_branch
      %58 = sbr.rel (0) target = $region29
    $region28: #{tpu_custom_call.1} parent=1 // pred_region
      _
    $region29: #{tpu_custom_call.1} parent=1 // pred_fallthru
      _
    // Predicated region
    $region30: #{tpu_custom_call.1} parent=1 // pred_check
      _
    $region31: #{tpu_custom_call.1} parent=1 // pred_check_branch
      %60 = sbr.rel (0) target = $region33
    $region32: #{tpu_custom_call.1} parent=1 // pred_region
      %61 = dma.done [#allocation4], 2048
    $region33: #{tpu_custom_call.1} parent=1 // pred_fallthru
      _
    // Predicated region
    $region34: #{tpu_custom_call.1} parent=1 // pred_check
      _
    $region35: #{tpu_custom_call.1} parent=1 // pred_check_branch
      %63 = sbr.rel (0) target = $region37
    $region36: #{tpu_custom_call.1} parent=1 // pred_region
      %64 = dma.done [#allocation7], 6144
    $region37: #{tpu_custom_call.1} parent=1 // pred_fallthru
      _
    // Predicated region
    $region38: #{tpu_custom_call.1} parent=1 // pred_check
      _
    $region39: #{tpu_custom_call.1} parent=1 // pred_check_branch
      %66 = sbr.rel (0) target = $region41
    $region40: #{tpu_custom_call.1} parent=1 // pred_region
      %67 = dma.done [#allocation7], 6144
    $region41: #{tpu_custom_call.1} parent=1 // pred_fallthru
      _
    %68 = vst [vmem:[#allocation2] sm:$0x1] 0.0
    %69 = vst [vmem:[#allocation2 + $0x48] sm:$0x1] 0.0
    %70 = vst [vmem:[#allocation2 + $0x41] sm:$0x1] 0.0
    %71 = vst [vmem:[#allocation2 + $0x89] sm:$0x1] 0.0
    %v72 = vld [vmem:[#allocation3] sm:$0xff]
    %v73 = vld [vmem:[#allocation3 + $0x8] sm:$0xff]
    %v74 = vld [vmem:[#allocation3 + $0x10] sm:$0xff]
    %v75 = vld [vmem:[#allocation3 + $0x18] sm:$0xff]
    %v76 = vld [vmem:[#allocation3 + $0x20] sm:$0xff]
    %v77 = vld [vmem:[#allocation3 + $0x28] sm:$0xff]
    %v78 = vld [vmem:[#allocation3 + $0x30] sm:$0xff]
    %v79 = vld [vmem:[#allocation3 + $0x38] sm:$0xff]
    %v80 = vld [vmem:[#allocation3 + $0x40] sm:$0xff]
    %v81 = vld [vmem:[#allocation3 + $0x48] sm:$0xff]
    %v82 = vld [vmem:[#allocation3 + $0x50] sm:$0xff]
    %v83 = vld [vmem:[#allocation3 + $0x58] sm:$0xff]
    %v84 = vld [vmem:[#allocation3 + $0x60] sm:$0xff]
    %v85 = vld [vmem:[#allocation3 + $0x68] sm:$0xff]
    %v86 = vld [vmem:[#allocation3 + $0x70] sm:$0xff]
    %v87 = vld [vmem:[#allocation3 + $0x78] sm:$0xff]
    %88 = vst [vmem:[#allocation2 + $0x1] sm:$0xff] %v72
    %89 = vst [vmem:[#allocation2 + $0x9] sm:$0xff] %v73
    %90 = vst [vmem:[#allocation2 + $0x11] sm:$0xff] %v74
    %91 = vst [vmem:[#allocation2 + $0x19] sm:$0xff] %v75
    %92 = vst [vmem:[#allocation2 + $0x21] sm:$0xff] %v76
    %93 = vst [vmem:[#allocation2 + $0x29] sm:$0xff] %v77
    %94 = vst [vmem:[#allocation2 + $0x31] sm:$0xff] %v78
    %95 = vst [vmem:[#allocation2 + $0x39] sm:$0xff] %v79
    %96 = vst [vmem:[#allocation2 + $0x49] sm:$0xff] %v80
    %97 = vst [vmem:[#allocation2 + $0x51] sm:$0xff] %v81
    %98 = vst [vmem:[#allocation2 + $0x59] sm:$0xff] %v82
    %99 = vst [vmem:[#allocation2 + $0x61] sm:$0xff] %v83
    %100 = vst [vmem:[#allocation2 + $0x69] sm:$0xff] %v84
    %101 = vst [vmem:[#allocation2 + $0x71] sm:$0xff] %v85
    %102 = vst [vmem:[#allocation2 + $0x79] sm:$0xff] %v86
    %103 = vst [vmem:[#allocation2 + $0x81] sm:$0xff] %v87
    %v104 = vld [vmem:[#allocation2] sm:$0xff]
    %v105 = vld [vmem:[#allocation2 + $0x8] sm:$0xff]
    %v106 = vld [vmem:[#allocation2 + $0x10] sm:$0xff]
    %v107 = vld [vmem:[#allocation2 + $0x18] sm:$0xff]
    %v108 = vld [vmem:[#allocation2 + $0x20] sm:$0xff]
    %v109 = vld [vmem:[#allocation2 + $0x28] sm:$0xff]
    %v110 = vld [vmem:[#allocation2 + $0x30] sm:$0xff]
    %v111 = vld [vmem:[#allocation2 + $0x38] sm:$0xff]
    %v112 = vld [vmem:[#allocation2 + $0x48] sm:$0xff]
    %v113 = vld [vmem:[#allocation2 + $0x50] sm:$0xff]
    %v114 = vld [vmem:[#allocation2 + $0x58] sm:$0xff]
    %v115 = vld [vmem:[#allocation2 + $0x60] sm:$0xff]
    %v116 = vld [vmem:[#allocation2 + $0x68] sm:$0xff]
    %v117 = vld [vmem:[#allocation2 + $0x70] sm:$0xff]
    %v118 = vld [vmem:[#allocation2 + $0x78] sm:$0xff]
    %v119 = vld [vmem:[#allocation2 + $0x80] sm:$0xff]
    %v120 = vld [vmem:[#allocation2 + $0x1] sm:$0xff]
    %v121 = vld [vmem:[#allocation2 + $0x9] sm:$0xff]
    %v122 = vld [vmem:[#allocation2 + $0x11] sm:$0xff]
    %v123 = vld [vmem:[#allocation2 + $0x19] sm:$0xff]
    %v124 = vld [vmem:[#allocation2 + $0x21] sm:$0xff]
    %v125 = vld [vmem:[#allocation2 + $0x29] sm:$0xff]
    %v126 = vld [vmem:[#allocation2 + $0x31] sm:$0xff]
    %v127 = vld [vmem:[#allocation2 + $0x39] sm:$0xff]
    %v128 = vld [vmem:[#allocation2 + $0x49] sm:$0xff]
    %v129 = vld [vmem:[#allocation2 + $0x51] sm:$0xff]
    %v130 = vld [vmem:[#allocation2 + $0x59] sm:$0xff]
    %v131 = vld [vmem:[#allocation2 + $0x61] sm:$0xff]
    %v132 = vld [vmem:[#allocation2 + $0x69] sm:$0xff]
    %v133 = vld [vmem:[#allocation2 + $0x71] sm:$0xff]
    %v134 = vld [vmem:[#allocation2 + $0x79] sm:$0xff]
    %v135 = vld [vmem:[#allocation2 + $0x81] sm:$0xff]
    %v136 = vld [vmem:[#allocation2 + $0x2] sm:$0xff]
    %v137 = vld [vmem:[#allocation2 + $0xa] sm:$0xff]
    %v138 = vld [vmem:[#allocation2 + $0x12] sm:$0xff]
    %v139 = vld [vmem:[#allocation2 + $0x1a] sm:$0xff]
    %v140 = vld [vmem:[#allocation2 + $0x22] sm:$0xff]
    %v141 = vld [vmem:[#allocation2 + $0x2a] sm:$0xff]
    %v142 = vld [vmem:[#allocation2 + $0x32] sm:$0xff]
    %v143 = vld [vmem:[#allocation2 + $0x3a] sm:$0xff]
    %v144 = vld [vmem:[#allocation2 + $0x4a] sm:$0xff]
    %v145 = vld [vmem:[#allocation2 + $0x52] sm:$0xff]
    %v146 = vld [vmem:[#allocation2 + $0x5a] sm:$0xff]
    %v147 = vld [vmem:[#allocation2 + $0x62] sm:$0xff]
    %v148 = vld [vmem:[#allocation2 + $0x6a] sm:$0xff]
    %v149 = vld [vmem:[#allocation2 + $0x72] sm:$0xff]
    %v150 = vld [vmem:[#allocation2 + $0x7a] sm:$0xff]
    %v151 = vld [vmem:[#allocation2 + $0x82] sm:$0xff]
    %v152 = vld [vmem:[#allocation6] sm:$0xff]
    %v153 = vld [vmem:[#allocation6 + $0x8] sm:$0xff]
    %v154 = vld [vmem:[#allocation6 + $0x10] sm:$0xff]
    %v155 = vld [vmem:[#allocation6 + $0x18] sm:$0xff]
    %v156 = vld [vmem:[#allocation6 + $0x20] sm:$0xff]
    %v157 = vld [vmem:[#allocation6 + $0x28] sm:$0xff]
    %v158 = vld [vmem:[#allocation6 + $0x30] sm:$0xff]
    %v159 = vld [vmem:[#allocation6 + $0x38] sm:$0xff]
    %v160 = vld [vmem:[#allocation6 + $0x40] sm:$0xff]
    %v161 = vld [vmem:[#allocation6 + $0x48] sm:$0xff]
    %v162 = vld [vmem:[#allocation6 + $0x50] sm:$0xff]
    %v163 = vld [vmem:[#allocation6 + $0x58] sm:$0xff]
    %v164 = vld [vmem:[#allocation6 + $0x60] sm:$0xff]
    %v165 = vld [vmem:[#allocation6 + $0x68] sm:$0xff]
    %v166 = vld [vmem:[#allocation6 + $0x70] sm:$0xff]
    %v167 = vld [vmem:[#allocation6 + $0x78] sm:$0xff]
    %v168 = vld [vmem:[#allocation6 + $0x80] sm:$0xff]
    %v169 = vld [vmem:[#allocation6 + $0x88] sm:$0xff]
    %v170 = vld [vmem:[#allocation6 + $0x90] sm:$0xff]
    %v171 = vld [vmem:[#allocation6 + $0x98] sm:$0xff]
    %v172 = vld [vmem:[#allocation6 + $0xa0] sm:$0xff]
    %v173 = vld [vmem:[#allocation6 + $0xa8] sm:$0xff]
    %v174 = vld [vmem:[#allocation6 + $0xb0] sm:$0xff]
    %v175 = vld [vmem:[#allocation6 + $0xb8] sm:$0xff]
    %v176 = vld [vmem:[#allocation6 + $0xc0] sm:$0xff]
    %v177 = vld [vmem:[#allocation6 + $0xc8] sm:$0xff]
    %v178 = vld [vmem:[#allocation6 + $0xd0] sm:$0xff]
    %v179 = vld [vmem:[#allocation6 + $0xd8] sm:$0xff]
    %v180 = vld [vmem:[#allocation6 + $0xe0] sm:$0xff]
    %v181 = vld [vmem:[#allocation6 + $0xe8] sm:$0xff]
    %v182 = vld [vmem:[#allocation6 + $0xf0] sm:$0xff]
    %v183 = vld [vmem:[#allocation6 + $0xf8] sm:$0xff]
    %v184 = vld [vmem:[#allocation6 + $0x100] sm:$0xff]
    %v185 = vld [vmem:[#allocation6 + $0x108] sm:$0xff]
    %v186 = vld [vmem:[#allocation6 + $0x110] sm:$0xff]
    %v187 = vld [vmem:[#allocation6 + $0x118] sm:$0xff]
    %v188 = vld [vmem:[#allocation6 + $0x120] sm:$0xff]
    %v189 = vld [vmem:[#allocation6 + $0x128] sm:$0xff]
    %v190 = vld [vmem:[#allocation6 + $0x130] sm:$0xff]
    %v191 = vld [vmem:[#allocation6 + $0x138] sm:$0xff]
    %v192 = vld [vmem:[#allocation6 + $0x140] sm:$0xff]
    %v193 = vld [vmem:[#allocation6 + $0x148] sm:$0xff]
    %v194 = vld [vmem:[#allocation6 + $0x150] sm:$0xff]
    %v195 = vld [vmem:[#allocation6 + $0x158] sm:$0xff]
    %v196 = vld [vmem:[#allocation6 + $0x160] sm:$0xff]
    %v197 = vld [vmem:[#allocation6 + $0x168] sm:$0xff]
    %v198 = vld [vmem:[#allocation6 + $0x170] sm:$0xff]
    %v199 = vld [vmem:[#allocation6 + $0x178] sm:$0xff]
    %200 = vmatprep.subr.mxu0 0.0
    %201 = vmatpush1.msra.mxu0 %v152
    %202 = vmatprep.subr.mxu0 0.0
    %203 = vmatpush1.msra.mxu0 %v153
    %204 = vmatprep.subr.mxu0 0.0
    %205 = vmatpush1.msra.mxu0 %v154
    %206 = vmatprep.subr.mxu0 0.0
    %207 = vmatpush1.msra.mxu0 %v155
    %208 = vmatprep.subr.mxu0 0.0
    %209 = vmatpush1.msra.mxu0 %v156
    %210 = vmatprep.subr.mxu0 0.0
    %211 = vmatpush1.msra.mxu0 %v157
    %212 = vmatprep.subr.mxu0 0.0
    %213 = vmatpush1.msra.mxu0 %v158
    %214 = vmatprep.subr.mxu0 0.0
    %215 = vmatpush1.msra.mxu0 %v159
    %216 = vmatprep.subr.mxu0 0.0
    %217 = vmatpush1.msra.mxu0 %v160
    %218 = vmatprep.subr.mxu0 0.0
    %219 = vmatpush1.msra.mxu0 %v161
    %220 = vmatprep.subr.mxu0 0.0
    %221 = vmatpush1.msra.mxu0 %v162
    %222 = vmatprep.subr.mxu0 0.0
    %223 = vmatpush1.msra.mxu0 %v163
    %224 = vmatprep.subr.mxu0 0.0
    %225 = vmatpush1.msra.mxu0 %v164
    %226 = vmatprep.subr.mxu0 0.0
    %227 = vmatpush1.msra.mxu0 %v165
    %228 = vmatprep.subr.mxu0 0.0
    %229 = vmatpush1.msra.mxu0 %v166
    %230 = vmatprep.subr.mxu0 0.0
    %231 = vmatpush1.msra.mxu0 %v167
    %232 = vmatprep.subr.mxu0 0.0
    %233 = vmatpush1.msra.mxu0 %v168
    %234 = vmatprep.subr.mxu0 0.0
    %235 = vmatpush1.msra.mxu0 %v169
    %236 = vmatprep.subr.mxu0 0.0
    %237 = vmatpush1.msra.mxu0 %v170
    %238 = vmatprep.subr.mxu0 0.0
    %239 = vmatpush1.msra.mxu0 %v171
    %240 = vmatprep.subr.mxu0 0.0
    %241 = vmatpush1.msra.mxu0 %v172
    %242 = vmatprep.subr.mxu0 0.0
    %243 = vmatpush1.msra.mxu0 %v173
    %244 = vmatprep.subr.mxu0 0.0
    %245 = vmatpush1.msra.mxu0 %v174
    %246 = vmatprep.subr.mxu0 0.0
    %247 = vmatpush1.msra.mxu0 %v175
    %248 = vmatprep.subr.mxu0 0.0
    %249 = vmatpush1.msra.mxu0 %v176
    %250 = vmatprep.subr.mxu0 0.0
    %251 = vmatpush1.msra.mxu0 %v177
    %252 = vmatprep.subr.mxu0 0.0
    %253 = vmatpush1.msra.mxu0 %v178
    %254 = vmatprep.subr.mxu0 0.0
    %255 = vmatpush1.msra.mxu0 %v179
    %256 = vmatprep.subr.mxu0 0.0
    %257 = vmatpush1.msra.mxu0 %v180
    %258 = vmatprep.subr.mxu0 0.0
    %259 = vmatpush1.msra.mxu0 %v181
    %260 = vmatprep.subr.mxu0 0.0
    %261 = vmatpush1.msra.mxu0 %v182
    %262 = vmatprep.subr.mxu0 0.0
    %263 = vmatpush1.msra.mxu0 %v183
    %264 = vmatprep.mubr.f32.mxu0 %v120
    %265 = vmatmul.mubr.f32.gmra.mrb[0].mxu0 %v104
    %v266 = vpop.f32.mrb[0].mxu0
    %v267 = vadd.f32 0.0, %v266
    %v268 = vpop.f32.mrb[0].mxu0
    %269 = vmatprep.mubr.f32.mxu0 %v121
    %270 = vmatmul.mubr.f32.gmra.mrb[0].mxu0 %v105
    %v271 = vpop.f32.mrb[0].mxu0
    %v272 = vadd.f32 0.0, %v271
    %v273 = vpop.f32.mrb[0].mxu0
    %274 = vmatprep.mubr.f32.mxu0 %v122
    %275 = vmatmul.mubr.f32.gmra.mrb[0].mxu0 %v106
    %v276 = vpop.f32.mrb[0].mxu0
    %v277 = vadd.f32 0.0, %v276
    %v278 = vpop.f32.mrb[0].mxu0
    %279 = vmatprep.mubr.f32.mxu0 %v123
    %280 = vmatmul.mubr.f32.gmra.mrb[0].mxu0 %v107
    %v281 = vpop.f32.mrb[0].mxu0
    %v282 = vadd.f32 0.0, %v281
    %v283 = vpop.f32.mrb[0].mxu0
    %284 = vmatprep.mubr.f32.mxu0 %v124
    %285 = vmatmul.mubr.f32.gmra.mrb[0].mxu0 %v108
    %v286 = vpop.f32.mrb[0].mxu0
    %v287 = vadd.f32 0.0, %v286
    %v288 = vpop.f32.mrb[0].mxu0
    %289 = vmatprep.mubr.f32.mxu0 %v125
    %290 = vmatmul.mubr.f32.gmra.mrb[0].mxu0 %v109
    %v291 = vpop.f32.mrb[0].mxu0
    %v292 = vadd.f32 0.0, %v291
    %v293 = vpop.f32.mrb[0].mxu0
    %294 = vmatprep.mubr.f32.mxu0 %v126
    %295 = vmatmul.mubr.f32.gmra.mrb[0].mxu0 %v110
    %v296 = vpop.f32.mrb[0].mxu0
    %v297 = vadd.f32 0.0, %v296
    %v298 = vpop.f32.mrb[0].mxu0
    %299 = vmatprep.mubr.f32.mxu0 %v127
    %300 = vmatmul.mubr.f32.gmra.mrb[0].mxu0 %v111
    %v301 = vpop.f32.mrb[0].mxu0
    %v302 = vadd.f32 0.0, %v301
    %v303 = vpop.f32.mrb[0].mxu0
    %304 = vmatprep.mubr.f32.mxu0 %v128
    %305 = vmatmul.mubr.f32.gmra.mrb[0].mxu0 %v112
    %v306 = vpop.f32.mrb[0].mxu0
    %v307 = vadd.f32 0.0, %v306
    %v308 = vpop.f32.mrb[0].mxu0
    %309 = vmatprep.mubr.f32.mxu0 %v129
    %310 = vmatmul.mubr.f32.gmra.mrb[0].mxu0 %v113
    %v311 = vpop.f32.mrb[0].mxu0
    %v312 = vadd.f32 0.0, %v311
    %v313 = vpop.f32.mrb[0].mxu0
    %314 = vmatprep.mubr.f32.mxu0 %v130
    %315 = vmatmul.mubr.f32.gmra.mrb[0].mxu0 %v114
    %v316 = vpop.f32.mrb[0].mxu0
    %v317 = vadd.f32 0.0, %v316
    %v318 = vpop.f32.mrb[0].mxu0
    %319 = vmatprep.mubr.f32.mxu0 %v131
    %320 = vmatmul.mubr.f32.gmra.mrb[0].mxu0 %v115
    %v321 = vpop.f32.mrb[0].mxu0
    %v322 = vadd.f32 0.0, %v321
    %v323 = vpop.f32.mrb[0].mxu0
    %324 = vmatprep.mubr.f32.mxu0 %v132
    %325 = vmatmul.mubr.f32.gmra.mrb[0].mxu0 %v116
    %v326 = vpop.f32.mrb[0].mxu0
    %v327 = vadd.f32 0.0, %v326
    %v328 = vpop.f32.mrb[0].mxu0
    %329 = vmatprep.mubr.f32.mxu0 %v133
    %330 = vmatmul.mubr.f32.gmra.mrb[0].mxu0 %v117
    %v331 = vpop.f32.mrb[0].mxu0
    %v332 = vadd.f32 0.0, %v331
    %v333 = vpop.f32.mrb[0].mxu0
    %334 = vmatprep.mubr.f32.mxu0 %v134
    %335 = vmatmul.mubr.f32.gmra.mrb[0].mxu0 %v118
    %v336 = vpop.f32.mrb[0].mxu0
    %v337 = vadd.f32 0.0, %v336
    %v338 = vpop.f32.mrb[0].mxu0
    %339 = vmatprep.mubr.f32.mxu0 %v135
    %340 = vmatmul.mubr.f32.gmra.mrb[0].mxu0 %v119
    %v341 = vpop.f32.mrb[0].mxu0
    %v342 = vadd.f32 0.0, %v341
    %v343 = vpop.f32.mrb[0].mxu0
    %344 = vdwg.mxu0
    %345 = vmatprep.subr.mxu0 0.0
    %346 = vmatpush1.msra.mxu0 %v184
    %347 = vmatprep.subr.mxu0 0.0
    %348 = vmatpush1.msra.mxu0 %v185
    %349 = vmatprep.subr.mxu0 0.0
    %350 = vmatpush1.msra.mxu0 %v186
    %351 = vmatprep.subr.mxu0 0.0
    %352 = vmatpush1.msra.mxu0 %v187
    %353 = vmatprep.subr.mxu0 0.0
    %354 = vmatpush1.msra.mxu0 %v188
    %355 = vmatprep.subr.mxu0 0.0
    %356 = vmatpush1.msra.mxu0 %v189
    %357 = vmatprep.subr.mxu0 0.0
    %358 = vmatpush1.msra.mxu0 %v190
    %359 = vmatprep.subr.mxu0 0.0
    %360 = vmatpush1.msra.mxu0 %v191
    %361 = vmatprep.subr.mxu0 0.0
    %362 = vmatpush1.msra.mxu0 %v192
    %363 = vmatprep.subr.mxu0 0.0
    %364 = vmatpush1.msra.mxu0 %v193
    %365 = vmatprep.subr.mxu0 0.0
    %366 = vmatpush1.msra.mxu0 %v194
    %367 = vmatprep.subr.mxu0 0.0
    %368 = vmatpush1.msra.mxu0 %v195
    %369 = vmatprep.subr.mxu0 0.0
    %370 = vmatpush1.msra.mxu0 %v196
    %371 = vmatprep.subr.mxu0 0.0
    %372 = vmatpush1.msra.mxu0 %v197
    %373 = vmatprep.subr.mxu0 0.0
    %374 = vmatpush1.msra.mxu0 %v198
    %375 = vmatprep.subr.mxu0 0.0
    %376 = vmatpush1.msra.mxu0 %v199
    %377 = vmatprep.subr.mxu0 0.0
    %378 = vmatpush1.msra.mxu0 0.0
    %379 = vmatprep.subr.mxu0 0.0
    %380 = vmatpush1.msra.mxu0 0.0
    %381 = vmatprep.subr.mxu0 0.0
    %382 = vmatpush1.msra.mxu0 0.0
    %383 = vmatprep.subr.mxu0 0.0
    %384 = vmatpush1.msra.mxu0 0.0
    %385 = vmatprep.subr.mxu0 0.0
    %386 = vmatpush1.msra.mxu0 0.0
    %387 = vmatprep.subr.mxu0 0.0
    %388 = vmatpush1.msra.mxu0 0.0
    %389 = vmatprep.subr.mxu0 0.0
    %390 = vmatpush1.msra.mxu0 0.0
    %391 = vmatprep.subr.mxu0 0.0
    %392 = vmatpush1.msra.mxu0 0.0
    %393 = vmatprep.subr.mxu0 0.0
    %394 = vmatpush1.msra.mxu0 0.0
    %395 = vmatprep.subr.mxu0 0.0
    %396 = vmatpush1.msra.mxu0 0.0
    %397 = vmatprep.subr.mxu0 0.0
    %398 = vmatpush1.msra.mxu0 0.0
    %399 = vmatprep.subr.mxu0 0.0
    %400 = vmatpush1.msra.mxu0 0.0
    %401 = vmatprep.subr.mxu0 0.0
    %402 = vmatpush1.msra.mxu0 0.0
    %403 = vmatprep.subr.mxu0 0.0
    %404 = vmatpush1.msra.mxu0 0.0
    %405 = vmatprep.subr.mxu0 0.0
    %406 = vmatpush1.msra.mxu0 0.0
    %407 = vmatprep.subr.mxu0 0.0
    %408 = vmatpush1.msra.mxu0 0.0
    %409 = vmatprep.mubr.f32.mxu0 0.0
    %410 = vmatmul.mubr.f32.gmra.mrb[0].mxu0 %v136
    %v411 = vpop.f32.mrb[0].mxu0
    %v412 = vadd.f32 %v267, %v411
    %v413 = vpop.f32.mrb[0].mxu0
    %414 = vmatprep.mubr.f32.mxu0 0.0
    %415 = vmatmul.mubr.f32.gmra.mrb[0].mxu0 %v137
    %v416 = vpop.f32.mrb[0].mxu0
    %v417 = vadd.f32 %v272, %v416
    %v418 = vpop.f32.mrb[0].mxu0
    %419 = vmatprep.mubr.f32.mxu0 0.0
    %420 = vmatmul.mubr.f32.gmra.mrb[0].mxu0 %v138
    %v421 = vpop.f32.mrb[0].mxu0
    %v422 = vadd.f32 %v277, %v421
    %v423 = vpop.f32.mrb[0].mxu0
    %424 = vmatprep.mubr.f32.mxu0 0.0
    %425 = vmatmul.mubr.f32.gmra.mrb[0].mxu0 %v139
    %v426 = vpop.f32.mrb[0].mxu0
    %v427 = vadd.f32 %v282, %v426
    %v428 = vpop.f32.mrb[0].mxu0
    %429 = vmatprep.mubr.f32.mxu0 0.0
    %430 = vmatmul.mubr.f32.gmra.mrb[0].mxu0 %v140
    %v431 = vpop.f32.mrb[0].mxu0
    %v432 = vadd.f32 %v287, %v431
    %v433 = vpop.f32.mrb[0].mxu0
    %434 = vmatprep.mubr.f32.mxu0 0.0
    %435 = vmatmul.mubr.f32.gmra.mrb[0].mxu0 %v141
    %v436 = vpop.f32.mrb[0].mxu0
    %v437 = vadd.f32 %v292, %v436
    %v438 = vpop.f32.mrb[0].mxu0
    %439 = vmatprep.mubr.f32.mxu0 0.0
    %440 = vmatmul.mubr.f32.gmra.mrb[0].mxu0 %v142
    %v441 = vpop.f32.mrb[0].mxu0
    %v442 = vadd.f32 %v297, %v441
    %v443 = vpop.f32.mrb[0].mxu0
    %444 = vmatprep.mubr.f32.mxu0 0.0
    %445 = vmatmul.mubr.f32.gmra.mrb[0].mxu0 %v143
    %v446 = vpop.f32.mrb[0].mxu0
    %v447 = vadd.f32 %v302, %v446
    %v448 = vpop.f32.mrb[0].mxu0
    %449 = vmatprep.mubr.f32.mxu0 0.0
    %450 = vmatmul.mubr.f32.gmra.mrb[0].mxu0 %v144
    %v451 = vpop.f32.mrb[0].mxu0
    %v452 = vadd.f32 %v307, %v451
    %v453 = vpop.f32.mrb[0].mxu0
    %454 = vmatprep.mubr.f32.mxu0 0.0
    %455 = vmatmul.mubr.f32.gmra.mrb[0].mxu0 %v145
    %v456 = vpop.f32.mrb[0].mxu0
    %v457 = vadd.f32 %v312, %v456
    %v458 = vpop.f32.mrb[0].mxu0
    %459 = vmatprep.mubr.f32.mxu0 0.0
    %460 = vmatmul.mubr.f32.gmra.mrb[0].mxu0 %v146
    %v461 = vpop.f32.mrb[0].mxu0
    %v462 = vadd.f32 %v317, %v461
    %v463 = vpop.f32.mrb[0].mxu0
    %464 = vmatprep.mubr.f32.mxu0 0.0
    %465 = vmatmul.mubr.f32.gmra.mrb[0].mxu0 %v147
    %v466 = vpop.f32.mrb[0].mxu0
    %v467 = vadd.f32 %v322, %v466
    %v468 = vpop.f32.mrb[0].mxu0
    %469 = vmatprep.mubr.f32.mxu0 0.0
    %470 = vmatmul.mubr.f32.gmra.mrb[0].mxu0 %v148
    %v471 = vpop.f32.mrb[0].mxu0
    %v472 = vadd.f32 %v327, %v471
    %v473 = vpop.f32.mrb[0].mxu0
    %474 = vmatprep.mubr.f32.mxu0 0.0
    %475 = vmatmul.mubr.f32.gmra.mrb[0].mxu0 %v149
    %v476 = vpop.f32.mrb[0].mxu0
    %v477 = vadd.f32 %v332, %v476
    %v478 = vpop.f32.mrb[0].mxu0
    %479 = vmatprep.mubr.f32.mxu0 0.0
    %480 = vmatmul.mubr.f32.gmra.mrb[0].mxu0 %v150
    %v481 = vpop.f32.mrb[0].mxu0
    %v482 = vadd.f32 %v337, %v481
    %v483 = vpop.f32.mrb[0].mxu0
    %484 = vmatprep.mubr.f32.mxu0 0.0
    %485 = vmatmul.mubr.f32.gmra.mrb[0].mxu0 %v151
    %v486 = vpop.f32.mrb[0].mxu0
    %v487 = vadd.f32 %v342, %v486
    %v488 = vpop.f32.mrb[0].mxu0
    %489 = vdwg.mxu0
    %v490 = vadd.f32 %v412, %v417
    %v491 = vadd.f32 %v490, %v422
    %v492 = vadd.f32 %v491, %v427
    %v493 = vadd.f32 %v492, %v432
    %v494 = vadd.f32 %v493, %v437
    %v495 = vadd.f32 %v494, %v442
    %v496 = vadd.f32 %v495, %v447
    %v497 = vadd.f32 %v496, %v452
    %v498 = vadd.f32 %v497, %v457
    %v499 = vadd.f32 %v498, %v462
    %v500 = vadd.f32 %v499, %v467
    %v501 = vadd.f32 %v500, %v472
    %v502 = vadd.f32 %v501, %v477
    %v503 = vadd.f32 %v502, %v482
    %v504 = vadd.f32 %v503, %v487
    %v505 = vrot.slane %v504, 4
    %v506 = vadd.f32 %v504, %v505
    %v507 = vrot.slane %v506, 2
    %v508 = vadd.f32 %v506, %v507
    %v509 = vrot.slane %v508, 1
    %v510 = vadd.f32 %v508, %v509
    %v511 = vmul.f32 %v510, 0.0078125
    %v512 = vmul.f32 %v412, %v412
    %v513 = vmul.f32 %v417, %v417
    %v514 = vmul.f32 %v422, %v422
    %v515 = vmul.f32 %v427, %v427
    %v516 = vmul.f32 %v432, %v432
    %v517 = vmul.f32 %v437, %v437
    %v518 = vmul.f32 %v442, %v442
    %v519 = vmul.f32 %v447, %v447
    %v520 = vmul.f32 %v452, %v452
    %v521 = vmul.f32 %v457, %v457
    %v522 = vmul.f32 %v462, %v462
    %v523 = vmul.f32 %v467, %v467
    %v524 = vmul.f32 %v472, %v472
    %v525 = vmul.f32 %v477, %v477
    %v526 = vmul.f32 %v482, %v482
    %v527 = vmul.f32 %v487, %v487
    %v528 = vadd.f32 %v512, %v513
    %v529 = vadd.f32 %v528, %v514
    %v530 = vadd.f32 %v529, %v515
    %v531 = vadd.f32 %v530, %v516
    %v532 = vadd.f32 %v531, %v517
    %v533 = vadd.f32 %v532, %v518
    %v534 = vadd.f32 %v533, %v519
    %v535 = vadd.f32 %v534, %v520
    %v536 = vadd.f32 %v535, %v521
    %v537 = vadd.f32 %v536, %v522
    %v538 = vadd.f32 %v537, %v523
    %v539 = vadd.f32 %v538, %v524
    %v540 = vadd.f32 %v539, %v525
    %v541 = vadd.f32 %v540, %v526
    %v542 = vadd.f32 %v541, %v527
    %v543 = vrot.slane %v542, 4
    %v544 = vadd.f32 %v542, %v543
    %v545 = vrot.slane %v544, 2
    %v546 = vadd.f32 %v544, %v545
    %v547 = vrot.slane %v546, 1
    %v548 = vadd.f32 %v546, %v547
    %v549 = vmul.f32 %v548, 0.0078125
    %v550 = vmul.f32 %v511, %v511
    %v551 = vsub.f32 %v549, %v550
    %v552 = vld [vmem:[%s2] sm:$0x1]
    %v553 = vadd.f32 %v551, 1e-05
    %v554 = vrsqrt.pop %v553
    %v555 = vmul.f32 %v552, %v554
    %v556 = vld [vmem:[%s3] sm:$0x1]
    %v557 = vmul.f32 %v511, %v555
    %v558 = vsub.f32 %v556, %v557
    %v560 = vlaneseq
    %v561 = vshrl.u32 %v560, 7
    %v562 = vsub.s32 0, %v561
    %v563 = vrot.slane %v555, %v562
    %v565 = vmul.f32 %v412, %v563
    %v566 = vmul.f32 %v417, %v563
    %v567 = vmul.f32 %v422, %v563
    %v568 = vmul.f32 %v427, %v563
    %v569 = vmul.f32 %v432, %v563
    %v570 = vmul.f32 %v437, %v563
    %v571 = vmul.f32 %v442, %v563
    %v572 = vmul.f32 %v447, %v563
    %v573 = vmul.f32 %v452, %v563
    %v574 = vmul.f32 %v457, %v563
    %v575 = vmul.f32 %v462, %v563
    %v576 = vmul.f32 %v467, %v563
    %v577 = vmul.f32 %v472, %v563
    %v578 = vmul.f32 %v477, %v563
    %v579 = vmul.f32 %v482, %v563
    %v580 = vmul.f32 %v487, %v563
    %v582 = vlaneseq
    %v583 = vshrl.u32 %v582, 7
    %v584 = vsub.s32 0, %v583
    %v585 = vrot.slane %v558, %v584
    %v587 = vadd.f32 %v565, %v585
    %v588 = vadd.f32 %v566, %v585
    %v589 = vadd.f32 %v567, %v585
    %v590 = vadd.f32 %v568, %v585
    %v591 = vadd.f32 %v569, %v585
    %v592 = vadd.f32 %v570, %v585
    %v593 = vadd.f32 %v571, %v585
    %v594 = vadd.f32 %v572, %v585
    %v595 = vadd.f32 %v573, %v585
    %v596 = vadd.f32 %v574, %v585
    %v597 = vadd.f32 %v575, %v585
    %v598 = vadd.f32 %v576, %v585
    %v599 = vadd.f32 %v577, %v585
    %v600 = vadd.f32 %v578, %v585
    %v601 = vadd.f32 %v579, %v585
    %v602 = vadd.f32 %v580, %v585
    %v603 = vmax.f32 %v587, 0.0
    %v604 = vmax.f32 %v588, 0.0
    %v605 = vmax.f32 %v589, 0.0
    %v606 = vmax.f32 %v590, 0.0
    %v607 = vmax.f32 %v591, 0.0
    %v608 = vmax.f32 %v592, 0.0
    %v609 = vmax.f32 %v593, 0.0
    %v610 = vmax.f32 %v594, 0.0
    %v611 = vmax.f32 %v595, 0.0
    %v612 = vmax.f32 %v596, 0.0
    %v613 = vmax.f32 %v597, 0.0
    %v614 = vmax.f32 %v598, 0.0
    %v615 = vmax.f32 %v599, 0.0
    %v616 = vmax.f32 %v600, 0.0
    %v617 = vmax.f32 %v601, 0.0
    %v618 = vmax.f32 %v602, 0.0
    %619 = vst [vmem:[#allocation2 + $0x1] sm:$0xff] %v603
    %620 = vst [vmem:[#allocation2 + $0x9] sm:$0xff] %v604
    %621 = vst [vmem:[#allocation2 + $0x11] sm:$0xff] %v605
    %622 = vst [vmem:[#allocation2 + $0x19] sm:$0xff] %v606
    %623 = vst [vmem:[#allocation2 + $0x21] sm:$0xff] %v607
    %624 = vst [vmem:[#allocation2 + $0x29] sm:$0xff] %v608
    %625 = vst [vmem:[#allocation2 + $0x31] sm:$0xff] %v609
    %626 = vst [vmem:[#allocation2 + $0x39] sm:$0xff] %v610
    %627 = vst [vmem:[#allocation2 + $0x49] sm:$0xff] %v611
    %628 = vst [vmem:[#allocation2 + $0x51] sm:$0xff] %v612
    %629 = vst [vmem:[#allocation2 + $0x59] sm:$0xff] %v613
    %630 = vst [vmem:[#allocation2 + $0x61] sm:$0xff] %v614
    %631 = vst [vmem:[#allocation2 + $0x69] sm:$0xff] %v615
    %632 = vst [vmem:[#allocation2 + $0x71] sm:$0xff] %v616
    %633 = vst [vmem:[#allocation2 + $0x79] sm:$0xff] %v617
    %634 = vst [vmem:[#allocation2 + $0x81] sm:$0xff] %v618
    %v635 = vld [vmem:[#allocation2] sm:$0xff]
    %v636 = vld [vmem:[#allocation2 + $0x8] sm:$0xff]
    %v637 = vld [vmem:[#allocation2 + $0x10] sm:$0xff]
    %v638 = vld [vmem:[#allocation2 + $0x18] sm:$0xff]
    %v639 = vld [vmem:[#allocation2 + $0x20] sm:$0xff]
    %v640 = vld [vmem:[#allocation2 + $0x28] sm:$0xff]
    %v641 = vld [vmem:[#allocation2 + $0x30] sm:$0xff]
    %v642 = vld [vmem:[#allocation2 + $0x38] sm:$0xff]
    %v643 = vld [vmem:[#allocation2 + $0x48] sm:$0xff]
    %v644 = vld [vmem:[#allocation2 + $0x50] sm:$0xff]
    %v645 = vld [vmem:[#allocation2 + $0x58] sm:$0xff]
    %v646 = vld [vmem:[#allocation2 + $0x60] sm:$0xff]
    %v647 = vld [vmem:[#allocation2 + $0x68] sm:$0xff]
    %v648 = vld [vmem:[#allocation2 + $0x70] sm:$0xff]
    %v649 = vld [vmem:[#allocation2 + $0x78] sm:$0xff]
    %v650 = vld [vmem:[#allocation2 + $0x80] sm:$0xff]
    %v651 = vld [vmem:[#allocation2 + $0x1] sm:$0xff]
    %v652 = vld [vmem:[#allocation2 + $0x9] sm:$0xff]
    %v653 = vld [vmem:[#allocation2 + $0x11] sm:$0xff]
    %v654 = vld [vmem:[#allocation2 + $0x19] sm:$0xff]
    %v655 = vld [vmem:[#allocation2 + $0x21] sm:$0xff]
    %v656 = vld [vmem:[#allocation2 + $0x29] sm:$0xff]
    %v657 = vld [vmem:[#allocation2 + $0x31] sm:$0xff]
    %v658 = vld [vmem:[#allocation2 + $0x39] sm:$0xff]
    %v659 = vld [vmem:[#allocation2 + $0x49] sm:$0xff]
    %v660 = vld [vmem:[#allocation2 + $0x51] sm:$0xff]
    %v661 = vld [vmem:[#allocation2 + $0x59] sm:$0xff]
    %v662 = vld [vmem:[#allocation2 + $0x61] sm:$0xff]
    %v663 = vld [vmem:[#allocation2 + $0x69] sm:$0xff]
    %v664 = vld [vmem:[#allocation2 + $0x71] sm:$0xff]
    %v665 = vld [vmem:[#allocation2 + $0x79] sm:$0xff]
    %v666 = vld [vmem:[#allocation2 + $0x81] sm:$0xff]
    %v667 = vld [vmem:[#allocation2 + $0x2] sm:$0xff]
    %v668 = vld [vmem:[#allocation2 + $0xa] sm:$0xff]
    %v669 = vld [vmem:[#allocation2 + $0x12] sm:$0xff]
    %v670 = vld [vmem:[#allocation2 + $0x1a] sm:$0xff]
    %v671 = vld [vmem:[#allocation2 + $0x22] sm:$0xff]
    %v672 = vld [vmem:[#allocation2 + $0x2a] sm:$0xff]
    %v673 = vld [vmem:[#allocation2 + $0x32] sm:$0xff]
    %v674 = vld [vmem:[#allocation2 + $0x3a] sm:$0xff]
    %v675 = vld [vmem:[#allocation2 + $0x4a] sm:$0xff]
    %v676 = vld [vmem:[#allocation2 + $0x52] sm:$0xff]
    %v677 = vld [vmem:[#allocation2 + $0x5a] sm:$0xff]
    %v678 = vld [vmem:[#allocation2 + $0x62] sm:$0xff]
    %v679 = vld [vmem:[#allocation2 + $0x6a] sm:$0xff]
    %v680 = vld [vmem:[#allocation2 + $0x72] sm:$0xff]
    %v681 = vld [vmem:[#allocation2 + $0x7a] sm:$0xff]
    %v682 = vld [vmem:[#allocation2 + $0x82] sm:$0xff]
    %v683 = vld [vmem:[#allocation8] sm:$0xff]
    %v684 = vld [vmem:[#allocation8 + $0x8] sm:$0xff]
    %v685 = vld [vmem:[#allocation8 + $0x10] sm:$0xff]
    %v686 = vld [vmem:[#allocation8 + $0x18] sm:$0xff]
    %v687 = vld [vmem:[#allocation8 + $0x20] sm:$0xff]
    %v688 = vld [vmem:[#allocation8 + $0x28] sm:$0xff]
    %v689 = vld [vmem:[#allocation8 + $0x30] sm:$0xff]
    %v690 = vld [vmem:[#allocation8 + $0x38] sm:$0xff]
    %v691 = vld [vmem:[#allocation8 + $0x40] sm:$0xff]
    %v692 = vld [vmem:[#allocation8 + $0x48] sm:$0xff]
    %v693 = vld [vmem:[#allocation8 + $0x50] sm:$0xff]
    %v694 = vld [vmem:[#allocation8 + $0x58] sm:$0xff]
    %v695 = vld [vmem:[#allocation8 + $0x60] sm:$0xff]
    %v696 = vld [vmem:[#allocation8 + $0x68] sm:$0xff]
    %v697 = vld [vmem:[#allocation8 + $0x70] sm:$0xff]
    %v698 = vld [vmem:[#allocation8 + $0x78] sm:$0xff]
    %v699 = vld [vmem:[#allocation8 + $0x80] sm:$0xff]
    %v700 = vld [vmem:[#allocation8 + $0x88] sm:$0xff]
    %v701 = vld [vmem:[#allocation8 + $0x90] sm:$0xff]
    %v702 = vld [vmem:[#allocation8 + $0x98] sm:$0xff]
    %v703 = vld [vmem:[#allocation8 + $0xa0] sm:$0xff]
    %v704 = vld [vmem:[#allocation8 + $0xa8] sm:$0xff]
    %v705 = vld [vmem:[#allocation8 + $0xb0] sm:$0xff]
    %v706 = vld [vmem:[#allocation8 + $0xb8] sm:$0xff]
    %v707 = vld [vmem:[#allocation8 + $0xc0] sm:$0xff]
    %v708 = vld [vmem:[#allocation8 + $0xc8] sm:$0xff]
    %v709 = vld [vmem:[#allocation8 + $0xd0] sm:$0xff]
    %v710 = vld [vmem:[#allocation8 + $0xd8] sm:$0xff]
    %v711 = vld [vmem:[#allocation8 + $0xe0] sm:$0xff]
    %v712 = vld [vmem:[#allocation8 + $0xe8] sm:$0xff]
    %v713 = vld [vmem:[#allocation8 + $0xf0] sm:$0xff]
    %v714 = vld [vmem:[#allocation8 + $0xf8] sm:$0xff]
    %v715 = vld [vmem:[#allocation8 + $0x100] sm:$0xff]
    %v716 = vld [vmem:[#allocation8 + $0x108] sm:$0xff]
    %v717 = vld [vmem:[#allocation8 + $0x110] sm:$0xff]
    %v718 = vld [vmem:[#allocation8 + $0x118] sm:$0xff]
    %v719 = vld [vmem:[#allocation8 + $0x120] sm:$0xff]
    %v720 = vld [vmem:[#allocation8 + $0x128] sm:$0xff]
    %v721 = vld [vmem:[#allocation8 + $0x130] sm:$0xff]
    %v722 = vld [vmem:[#allocation8 + $0x138] sm:$0xff]
    %v723 = vld [vmem:[#allocation8 + $0x140] sm:$0xff]
    %v724 = vld [vmem:[#allocation8 + $0x148] sm:$0xff]
    %v725 = vld [vmem:[#allocation8 + $0x150] sm:$0xff]
    %v726 = vld [vmem:[#allocation8 + $0x158] sm:$0xff]
    %v727 = vld [vmem:[#allocation8 + $0x160] sm:$0xff]
    %v728 = vld [vmem:[#allocation8 + $0x168] sm:$0xff]
    %v729 = vld [vmem:[#allocation8 + $0x170] sm:$0xff]
    %v730 = vld [vmem:[#allocation8 + $0x178] sm:$0xff]
    %731 = vmatprep.subr.mxu0 0.0
    %732 = vmatpush1.msra.mxu0 %v683
    %733 = vmatprep.subr.mxu0 0.0
    %734 = vmatpush1.msra.mxu0 %v684
    %735 = vmatprep.subr.mxu0 0.0
    %736 = vmatpush1.msra.mxu0 %v685
    %737 = vmatprep.subr.mxu0 0.0
    %738 = vmatpush1.msra.mxu0 %v686
    %739 = vmatprep.subr.mxu0 0.0
    %740 = vmatpush1.msra.mxu0 %v687
    %741 = vmatprep.subr.mxu0 0.0
    %742 = vmatpush1.msra.mxu0 %v688
    %743 = vmatprep.subr.mxu0 0.0
    %744 = vmatpush1.msra.mxu0 %v689
    %745 = vmatprep.subr.mxu0 0.0
    %746 = vmatpush1.msra.mxu0 %v690
    %747 = vmatprep.subr.mxu0 0.0
    %748 = vmatpush1.msra.mxu0 %v691
    %749 = vmatprep.subr.mxu0 0.0
    %750 = vmatpush1.msra.mxu0 %v692
    %751 = vmatprep.subr.mxu0 0.0
    %752 = vmatpush1.msra.mxu0 %v693
    %753 = vmatprep.subr.mxu0 0.0
    %754 = vmatpush1.msra.mxu0 %v694
    %755 = vmatprep.subr.mxu0 0.0
    %756 = vmatpush1.msra.mxu0 %v695
    %757 = vmatprep.subr.mxu0 0.0
    %758 = vmatpush1.msra.mxu0 %v696
    %759 = vmatprep.subr.mxu0 0.0
    %760 = vmatpush1.msra.mxu0 %v697
    %761 = vmatprep.subr.mxu0 0.0
    %762 = vmatpush1.msra.mxu0 %v698
    %763 = vmatprep.subr.mxu0 0.0
    %764 = vmatpush1.msra.mxu0 %v699
    %765 = vmatprep.subr.mxu0 0.0
    %766 = vmatpush1.msra.mxu0 %v700
    %767 = vmatprep.subr.mxu0 0.0
    %768 = vmatpush1.msra.mxu0 %v701
    %769 = vmatprep.subr.mxu0 0.0
    %770 = vmatpush1.msra.mxu0 %v702
    %771 = vmatprep.subr.mxu0 0.0
    %772 = vmatpush1.msra.mxu0 %v703
    %773 = vmatprep.subr.mxu0 0.0
    %774 = vmatpush1.msra.mxu0 %v704
    %775 = vmatprep.subr.mxu0 0.0
    %776 = vmatpush1.msra.mxu0 %v705
    %777 = vmatprep.subr.mxu0 0.0
    %778 = vmatpush1.msra.mxu0 %v706
    %779 = vmatprep.subr.mxu0 0.0
    %780 = vmatpush1.msra.mxu0 %v707
    %781 = vmatprep.subr.mxu0 0.0
    %782 = vmatpush1.msra.mxu0 %v708
    %783 = vmatprep.subr.mxu0 0.0
    %784 = vmatpush1.msra.mxu0 %v709
    %785 = vmatprep.subr.mxu0 0.0
    %786 = vmatpush1.msra.mxu0 %v710
    %787 = vmatprep.subr.mxu0 0.0
    %788 = vmatpush1.msra.mxu0 %v711
    %789 = vmatprep.subr.mxu0 0.0
    %790 = vmatpush1.msra.mxu0 %v712
    %791 = vmatprep.subr.mxu0 0.0
    %792 = vmatpush1.msra.mxu0 %v713
    %793 = vmatprep.subr.mxu0 0.0
    %794 = vmatpush1.msra.mxu0 %v714
    %795 = vmatprep.mubr.f32.mxu0 %v651
    %796 = vmatmul.mubr.f32.gmra.mrb[0].mxu0 %v635
    %v797 = vpop.f32.mrb[0].mxu0
    %v798 = vadd.f32 0.0, %v797
    %v799 = vpop.f32.mrb[0].mxu0
    %800 = vmatprep.mubr.f32.mxu0 %v652
    %801 = vmatmul.mubr.f32.gmra.mrb[0].mxu0 %v636
    %v802 = vpop.f32.mrb[0].mxu0
    %v803 = vadd.f32 0.0, %v802
    %v804 = vpop.f32.mrb[0].mxu0
    %805 = vmatprep.mubr.f32.mxu0 %v653
    %806 = vmatmul.mubr.f32.gmra.mrb[0].mxu0 %v637
    %v807 = vpop.f32.mrb[0].mxu0
    %v808 = vadd.f32 0.0, %v807
    %v809 = vpop.f32.mrb[0].mxu0
    %810 = vmatprep.mubr.f32.mxu0 %v654
    %811 = vmatmul.mubr.f32.gmra.mrb[0].mxu0 %v638
    %v812 = vpop.f32.mrb[0].mxu0
    %v813 = vadd.f32 0.0, %v812
    %v814 = vpop.f32.mrb[0].mxu0
    %815 = vmatprep.mubr.f32.mxu0 %v655
    %816 = vmatmul.mubr.f32.gmra.mrb[0].mxu0 %v639
    %v817 = vpop.f32.mrb[0].mxu0
    %v818 = vadd.f32 0.0, %v817
    %v819 = vpop.f32.mrb[0].mxu0
    %820 = vmatprep.mubr.f32.mxu0 %v656
    %821 = vmatmul.mubr.f32.gmra.mrb[0].mxu0 %v640
    %v822 = vpop.f32.mrb[0].mxu0
    %v823 = vadd.f32 0.0, %v822
    %v824 = vpop.f32.mrb[0].mxu0
    %825 = vmatprep.mubr.f32.mxu0 %v657
    %826 = vmatmul.mubr.f32.gmra.mrb[0].mxu0 %v641
    %v827 = vpop.f32.mrb[0].mxu0
    %v828 = vadd.f32 0.0, %v827
    %v829 = vpop.f32.mrb[0].mxu0
    %830 = vmatprep.mubr.f32.mxu0 %v658
    %831 = vmatmul.mubr.f32.gmra.mrb[0].mxu0 %v642
    %v832 = vpop.f32.mrb[0].mxu0
    %v833 = vadd.f32 0.0, %v832
    %v834 = vpop.f32.mrb[0].mxu0
    %835 = vmatprep.mubr.f32.mxu0 %v659
    %836 = vmatmul.mubr.f32.gmra.mrb[0].mxu0 %v643
    %v837 = vpop.f32.mrb[0].mxu0
    %v838 = vadd.f32 0.0, %v837
    %v839 = vpop.f32.mrb[0].mxu0
    %840 = vmatprep.mubr.f32.mxu0 %v660
    %841 = vmatmul.mubr.f32.gmra.mrb[0].mxu0 %v644
    %v842 = vpop.f32.mrb[0].mxu0
    %v843 = vadd.f32 0.0, %v842
    %v844 = vpop.f32.mrb[0].mxu0
    %845 = vmatprep.mubr.f32.mxu0 %v661
    %846 = vmatmul.mubr.f32.gmra.mrb[0].mxu0 %v645
    %v847 = vpop.f32.mrb[0].mxu0
    %v848 = vadd.f32 0.0, %v847
    %v849 = vpop.f32.mrb[0].mxu0
    %850 = vmatprep.mubr.f32.mxu0 %v662
    %851 = vmatmul.mubr.f32.gmra.mrb[0].mxu0 %v646
    %v852 = vpop.f32.mrb[0].mxu0
    %v853 = vadd.f32 0.0, %v852
    %v854 = vpop.f32.mrb[0].mxu0
    %855 = vmatprep.mubr.f32.mxu0 %v663
    %856 = vmatmul.mubr.f32.gmra.mrb[0].mxu0 %v647
    %v857 = vpop.f32.mrb[0].mxu0
    %v858 = vadd.f32 0.0, %v857
    %v859 = vpop.f32.mrb[0].mxu0
    %860 = vmatprep.mubr.f32.mxu0 %v664
    %861 = vmatmul.mubr.f32.gmra.mrb[0].mxu0 %v648
    %v862 = vpop.f32.mrb[0].mxu0
    %v863 = vadd.f32 0.0, %v862
    %v864 = vpop.f32.mrb[0].mxu0
    %865 = vmatprep.mubr.f32.mxu0 %v665
    %866 = vmatmul.mubr.f32.gmra.mrb[0].mxu0 %v649
    %v867 = vpop.f32.mrb[0].mxu0
    %v868 = vadd.f32 0.0, %v867
    %v869 = vpop.f32.mrb[0].mxu0
    %870 = vmatprep.mubr.f32.mxu0 %v666
    %871 = vmatmul.mubr.f32.gmra.mrb[0].mxu0 %v650
    %v872 = vpop.f32.mrb[0].mxu0
    %v873 = vadd.f32 0.0, %v872
    %v874 = vpop.f32.mrb[0].mxu0
    %875 = vdwg.mxu0
    %876 = vmatprep.subr.mxu0 0.0
    %877 = vmatpush1.msra.mxu0 %v715
    %878 = vmatprep.subr.mxu0 0.0
    %879 = vmatpush1.msra.mxu0 %v716
    %880 = vmatprep.subr.mxu0 0.0
    %881 = vmatpush1.msra.mxu0 %v717
    %882 = vmatprep.subr.mxu0 0.0
    %883 = vmatpush1.msra.mxu0 %v718
    %884 = vmatprep.subr.mxu0 0.0
    %885 = vmatpush1.msra.mxu0 %v719
    %886 = vmatprep.subr.mxu0 0.0
    %887 = vmatpush1.msra.mxu0 %v720
    %888 = vmatprep.subr.mxu0 0.0
    %889 = vmatpush1.msra.mxu0 %v721
    %890 = vmatprep.subr.mxu0 0.0
    %891 = vmatpush1.msra.mxu0 %v722
    %892 = vmatprep.subr.mxu0 0.0
    %893 = vmatpush1.msra.mxu0 %v723
    %894 = vmatprep.subr.mxu0 0.0
    %895 = vmatpush1.msra.mxu0 %v724
    %896 = vmatprep.subr.mxu0 0.0
    %897 = vmatpush1.msra.mxu0 %v725
    %898 = vmatprep.subr.mxu0 0.0
    %899 = vmatpush1.msra.mxu0 %v726
    %900 = vmatprep.subr.mxu0 0.0
    %901 = vmatpush1.msra.mxu0 %v727
    %902 = vmatprep.subr.mxu0 0.0
    %903 = vmatpush1.msra.mxu0 %v728
    %904 = vmatprep.subr.mxu0 0.0
    %905 = vmatpush1.msra.mxu0 %v729
    %906 = vmatprep.subr.mxu0 0.0
    %907 = vmatpush1.msra.mxu0 %v730
    %908 = vmatprep.subr.mxu0 0.0
    %909 = vmatpush1.msra.mxu0 0.0
    %910 = vmatprep.subr.mxu0 0.0
    %911 = vmatpush1.msra.mxu0 0.0
    %912 = vmatprep.subr.mxu0 0.0
    %913 = vmatpush1.msra.mxu0 0.0
    %914 = vmatprep.subr.mxu0 0.0
    %915 = vmatpush1.msra.mxu0 0.0
    %916 = vmatprep.subr.mxu0 0.0
    %917 = vmatpush1.msra.mxu0 0.0
    %918 = vmatprep.subr.mxu0 0.0
    %919 = vmatpush1.msra.mxu0 0.0
    %920 = vmatprep.subr.mxu0 0.0
    %921 = vmatpush1.msra.mxu0 0.0
    %922 = vmatprep.subr.mxu0 0.0
    %923 = vmatpush1.msra.mxu0 0.0
    %924 = vmatprep.subr.mxu0 0.0
    %925 = vmatpush1.msra.mxu0 0.0
    %926 = vmatprep.subr.mxu0 0.0
    %927 = vmatpush1.msra.mxu0 0.0
    %928 = vmatprep.subr.mxu0 0.0
    %929 = vmatpush1.msra.mxu0 0.0
    %930 = vmatprep.subr.mxu0 0.0
    %931 = vmatpush1.msra.mxu0 0.0
    %932 = vmatprep.subr.mxu0 0.0
    %933 = vmatpush1.msra.mxu0 0.0
    %934 = vmatprep.subr.mxu0 0.0
    %935 = vmatpush1.msra.mxu0 0.0
    %936 = vmatprep.subr.mxu0 0.0
    %937 = vmatpush1.msra.mxu0 0.0
    %938 = vmatprep.subr.mxu0 0.0
    %939 = vmatpush1.msra.mxu0 0.0
    %940 = vmatprep.mubr.f32.mxu0 0.0
    %941 = vmatmul.mubr.f32.gmra.mrb[0].mxu0 %v667
    %v942 = vpop.f32.mrb[0].mxu0
    %v943 = vadd.f32 %v798, %v942
    %v944 = vpop.f32.mrb[0].mxu0
    %945 = vmatprep.mubr.f32.mxu0 0.0
    %946 = vmatmul.mubr.f32.gmra.mrb[0].mxu0 %v668
    %v947 = vpop.f32.mrb[0].mxu0
    %v948 = vadd.f32 %v803, %v947
    %v949 = vpop.f32.mrb[0].mxu0
    %950 = vmatprep.mubr.f32.mxu0 0.0
    %951 = vmatmul.mubr.f32.gmra.mrb[0].mxu0 %v669
    %v952 = vpop.f32.mrb[0].mxu0
    %v953 = vadd.f32 %v808, %v952
    %v954 = vpop.f32.mrb[0].mxu0
    %955 = vmatprep.mubr.f32.mxu0 0.0
    %956 = vmatmul.mubr.f32.gmra.mrb[0].mxu0 %v670
    %v957 = vpop.f32.mrb[0].mxu0
    %v958 = vadd.f32 %v813, %v957
    %v959 = vpop.f32.mrb[0].mxu0
    %960 = vmatprep.mubr.f32.mxu0 0.0
    %961 = vmatmul.mubr.f32.gmra.mrb[0].mxu0 %v671
    %v962 = vpop.f32.mrb[0].mxu0
    %v963 = vadd.f32 %v818, %v962
    %v964 = vpop.f32.mrb[0].mxu0
    %965 = vmatprep.mubr.f32.mxu0 0.0
    %966 = vmatmul.mubr.f32.gmra.mrb[0].mxu0 %v672
    %v967 = vpop.f32.mrb[0].mxu0
    %v968 = vadd.f32 %v823, %v967
    %v969 = vpop.f32.mrb[0].mxu0
    %970 = vmatprep.mubr.f32.mxu0 0.0
    %971 = vmatmul.mubr.f32.gmra.mrb[0].mxu0 %v673
    %v972 = vpop.f32.mrb[0].mxu0
    %v973 = vadd.f32 %v828, %v972
    %v974 = vpop.f32.mrb[0].mxu0
    %975 = vmatprep.mubr.f32.mxu0 0.0
    %976 = vmatmul.mubr.f32.gmra.mrb[0].mxu0 %v674
    %v977 = vpop.f32.mrb[0].mxu0
    %v978 = vadd.f32 %v833, %v977
    %v979 = vpop.f32.mrb[0].mxu0
    %980 = vmatprep.mubr.f32.mxu0 0.0
    %981 = vmatmul.mubr.f32.gmra.mrb[0].mxu0 %v675
    %v982 = vpop.f32.mrb[0].mxu0
    %v983 = vadd.f32 %v838, %v982
    %v984 = vpop.f32.mrb[0].mxu0
    %985 = vmatprep.mubr.f32.mxu0 0.0
    %986 = vmatmul.mubr.f32.gmra.mrb[0].mxu0 %v676
    %v987 = vpop.f32.mrb[0].mxu0
    %v988 = vadd.f32 %v843, %v987
    %v989 = vpop.f32.mrb[0].mxu0
    %990 = vmatprep.mubr.f32.mxu0 0.0
    %991 = vmatmul.mubr.f32.gmra.mrb[0].mxu0 %v677
    %v992 = vpop.f32.mrb[0].mxu0
    %v993 = vadd.f32 %v848, %v992
    %v994 = vpop.f32.mrb[0].mxu0
    %995 = vmatprep.mubr.f32.mxu0 0.0
    %996 = vmatmul.mubr.f32.gmra.mrb[0].mxu0 %v678
    %v997 = vpop.f32.mrb[0].mxu0
    %v998 = vadd.f32 %v853, %v997
    %v999 = vpop.f32.mrb[0].mxu0
    %1000 = vmatprep.mubr.f32.mxu0 0.0
    %1001 = vmatmul.mubr.f32.gmra.mrb[0].mxu0 %v679
    %v1002 = vpop.f32.mrb[0].mxu0
    %v1003 = vadd.f32 %v858, %v1002
    %v1004 = vpop.f32.mrb[0].mxu0
    %1005 = vmatprep.mubr.f32.mxu0 0.0
    %1006 = vmatmul.mubr.f32.gmra.mrb[0].mxu0 %v680
    %v1007 = vpop.f32.mrb[0].mxu0
    %v1008 = vadd.f32 %v863, %v1007
    %v1009 = vpop.f32.mrb[0].mxu0
    %1010 = vmatprep.mubr.f32.mxu0 0.0
    %1011 = vmatmul.mubr.f32.gmra.mrb[0].mxu0 %v681
    %v1012 = vpop.f32.mrb[0].mxu0
    %v1013 = vadd.f32 %v868, %v1012
    %v1014 = vpop.f32.mrb[0].mxu0
    %1015 = vmatprep.mubr.f32.mxu0 0.0
    %1016 = vmatmul.mubr.f32.gmra.mrb[0].mxu0 %v682
    %v1017 = vpop.f32.mrb[0].mxu0
    %v1018 = vadd.f32 %v873, %v1017
    %v1019 = vpop.f32.mrb[0].mxu0
    %1020 = vdwg.mxu0
    %v1021 = vadd.f32 %v943, %v948
    %v1022 = vadd.f32 %v1021, %v953
    %v1023 = vadd.f32 %v1022, %v958
    %v1024 = vadd.f32 %v1023, %v963
    %v1025 = vadd.f32 %v1024, %v968
    %v1026 = vadd.f32 %v1025, %v973
    %v1027 = vadd.f32 %v1026, %v978
    %v1028 = vadd.f32 %v1027, %v983
    %v1029 = vadd.f32 %v1028, %v988
    %v1030 = vadd.f32 %v1029, %v993
    %v1031 = vadd.f32 %v1030, %v998
    %v1032 = vadd.f32 %v1031, %v1003
    %v1033 = vadd.f32 %v1032, %v1008
    %v1034 = vadd.f32 %v1033, %v1013
    %v1035 = vadd.f32 %v1034, %v1018
    %v1036 = vrot.slane %v1035, 4
    %v1037 = vadd.f32 %v1035, %v1036
    %v1038 = vrot.slane %v1037, 2
    %v1039 = vadd.f32 %v1037, %v1038
    %v1040 = vrot.slane %v1039, 1
    %v1041 = vadd.f32 %v1039, %v1040
    %v1042 = vmul.f32 %v1041, 0.0078125
    %v1043 = vmul.f32 %v943, %v943
    %v1044 = vmul.f32 %v948, %v948
    %v1045 = vmul.f32 %v953, %v953
    %v1046 = vmul.f32 %v958, %v958
    %v1047 = vmul.f32 %v963, %v963
    %v1048 = vmul.f32 %v968, %v968
    %v1049 = vmul.f32 %v973, %v973
    %v1050 = vmul.f32 %v978, %v978
    %v1051 = vmul.f32 %v983, %v983
    %v1052 = vmul.f32 %v988, %v988
    %v1053 = vmul.f32 %v993, %v993
    %v1054 = vmul.f32 %v998, %v998
    %v1055 = vmul.f32 %v1003, %v1003
    %v1056 = vmul.f32 %v1008, %v1008
    %v1057 = vmul.f32 %v1013, %v1013
    %v1058 = vmul.f32 %v1018, %v1018
    %v1059 = vadd.f32 %v1043, %v1044
    %v1060 = vadd.f32 %v1059, %v1045
    %v1061 = vadd.f32 %v1060, %v1046
    %v1062 = vadd.f32 %v1061, %v1047
    %v1063 = vadd.f32 %v1062, %v1048
    %v1064 = vadd.f32 %v1063, %v1049
    %v1065 = vadd.f32 %v1064, %v1050
    %v1066 = vadd.f32 %v1065, %v1051
    %v1067 = vadd.f32 %v1066, %v1052
    %v1068 = vadd.f32 %v1067, %v1053
    %v1069 = vadd.f32 %v1068, %v1054
    %v1070 = vadd.f32 %v1069, %v1055
    %v1071 = vadd.f32 %v1070, %v1056
    %v1072 = vadd.f32 %v1071, %v1057
    %v1073 = vadd.f32 %v1072, %v1058
    %v1074 = vrot.slane %v1073, 4
    %v1075 = vadd.f32 %v1073, %v1074
    %v1076 = vrot.slane %v1075, 2
    %v1077 = vadd.f32 %v1075, %v1076
    %v1078 = vrot.slane %v1077, 1
    %v1079 = vadd.f32 %v1077, %v1078
    %v1080 = vmul.f32 %v1079, 0.0078125
    %v1081 = vmul.f32 %v1042, %v1042
    %v1082 = vsub.f32 %v1080, %v1081
    %v1083 = vld [vmem:[%s5] sm:$0x1]
    %v1084 = vadd.f32 %v1082, 1e-05
    %v1085 = vrsqrt.pop %v1084
    %v1086 = vmul.f32 %v1083, %v1085
    %v1087 = vld [vmem:[%s6] sm:$0x1]
    %v1088 = vmul.f32 %v1042, %v1086
    %v1089 = vsub.f32 %v1087, %v1088
    %v1091 = vlaneseq
    %v1092 = vshrl.u32 %v1091, 7
    %v1093 = vsub.s32 0, %v1092
    %v1094 = vrot.slane %v1086, %v1093
    %v1096 = vmul.f32 %v943, %v1094
    %v1097 = vmul.f32 %v948, %v1094
    %v1098 = vmul.f32 %v953, %v1094
    %v1099 = vmul.f32 %v958, %v1094
    %v1100 = vmul.f32 %v963, %v1094
    %v1101 = vmul.f32 %v968, %v1094
    %v1102 = vmul.f32 %v973, %v1094
    %v1103 = vmul.f32 %v978, %v1094
    %v1104 = vmul.f32 %v983, %v1094
    %v1105 = vmul.f32 %v988, %v1094
    %v1106 = vmul.f32 %v993, %v1094
    %v1107 = vmul.f32 %v998, %v1094
    %v1108 = vmul.f32 %v1003, %v1094
    %v1109 = vmul.f32 %v1008, %v1094
    %v1110 = vmul.f32 %v1013, %v1094
    %v1111 = vmul.f32 %v1018, %v1094
    %v1113 = vlaneseq
    %v1114 = vshrl.u32 %v1113, 7
    %v1115 = vsub.s32 0, %v1114
    %v1116 = vrot.slane %v1089, %v1115
    %v1118 = vadd.f32 %v1096, %v1116
    %v1119 = vadd.f32 %v1097, %v1116
    %v1120 = vadd.f32 %v1098, %v1116
    %v1121 = vadd.f32 %v1099, %v1116
    %v1122 = vadd.f32 %v1100, %v1116
    %v1123 = vadd.f32 %v1101, %v1116
    %v1124 = vadd.f32 %v1102, %v1116
    %v1125 = vadd.f32 %v1103, %v1116
    %v1126 = vadd.f32 %v1104, %v1116
    %v1127 = vadd.f32 %v1105, %v1116
    %v1128 = vadd.f32 %v1106, %v1116
    %v1129 = vadd.f32 %v1107, %v1116
    %v1130 = vadd.f32 %v1108, %v1116
    %v1131 = vadd.f32 %v1109, %v1116
    %v1132 = vadd.f32 %v1110, %v1116
    %v1133 = vadd.f32 %v1111, %v1116
    %v1134 = vld [vmem:[#allocation3] sm:$0xff]
    %v1135 = vld [vmem:[#allocation3 + $0x8] sm:$0xff]
    %v1136 = vld [vmem:[#allocation3 + $0x10] sm:$0xff]
    %v1137 = vld [vmem:[#allocation3 + $0x18] sm:$0xff]
    %v1138 = vld [vmem:[#allocation3 + $0x20] sm:$0xff]
    %v1139 = vld [vmem:[#allocation3 + $0x28] sm:$0xff]
    %v1140 = vld [vmem:[#allocation3 + $0x30] sm:$0xff]
    %v1141 = vld [vmem:[#allocation3 + $0x38] sm:$0xff]
    %v1142 = vld [vmem:[#allocation3 + $0x40] sm:$0xff]
    %v1143 = vld [vmem:[#allocation3 + $0x48] sm:$0xff]
    %v1144 = vld [vmem:[#allocation3 + $0x50] sm:$0xff]
    %v1145 = vld [vmem:[#allocation3 + $0x58] sm:$0xff]
    %v1146 = vld [vmem:[#allocation3 + $0x60] sm:$0xff]
    %v1147 = vld [vmem:[#allocation3 + $0x68] sm:$0xff]
    %v1148 = vld [vmem:[#allocation3 + $0x70] sm:$0xff]
    %v1149 = vld [vmem:[#allocation3 + $0x78] sm:$0xff]
    %v1150 = vadd.f32 %v1134, %v1118
    %v1151 = vadd.f32 %v1135, %v1119
    %v1152 = vadd.f32 %v1136, %v1120
    %v1153 = vadd.f32 %v1137, %v1121
    %v1154 = vadd.f32 %v1138, %v1122
    %v1155 = vadd.f32 %v1139, %v1123
    %v1156 = vadd.f32 %v1140, %v1124
    %v1157 = vadd.f32 %v1141, %v1125
    %v1158 = vadd.f32 %v1142, %v1126
    %v1159 = vadd.f32 %v1143, %v1127
    %v1160 = vadd.f32 %v1144, %v1128
    %v1161 = vadd.f32 %v1145, %v1129
    %v1162 = vadd.f32 %v1146, %v1130
    %v1163 = vadd.f32 %v1147, %v1131
    %v1164 = vadd.f32 %v1148, %v1132
    %v1165 = vadd.f32 %v1149, %v1133
    %v1166 = vmax.f32 %v1150, 0.0
    %v1167 = vmax.f32 %v1151, 0.0
    %v1168 = vmax.f32 %v1152, 0.0
    %v1169 = vmax.f32 %v1153, 0.0
    %v1170 = vmax.f32 %v1154, 0.0
    %v1171 = vmax.f32 %v1155, 0.0
    %v1172 = vmax.f32 %v1156, 0.0
    %v1173 = vmax.f32 %v1157, 0.0
    %v1174 = vmax.f32 %v1158, 0.0
    %v1175 = vmax.f32 %v1159, 0.0
    %v1176 = vmax.f32 %v1160, 0.0
    %v1177 = vmax.f32 %v1161, 0.0
    %v1178 = vmax.f32 %v1162, 0.0
    %v1179 = vmax.f32 %v1163, 0.0
    %v1180 = vmax.f32 %v1164, 0.0
    %v1181 = vmax.f32 %v1165, 0.0
    %1182 = vst [vmem:[#allocation9] sm:$0xff] %v1166
    %1183 = vst [vmem:[#allocation9 + $0x8] sm:$0xff] %v1167
    %1184 = vst [vmem:[#allocation9 + $0x10] sm:$0xff] %v1168
    %1185 = vst [vmem:[#allocation9 + $0x18] sm:$0xff] %v1169
    %1186 = vst [vmem:[#allocation9 + $0x20] sm:$0xff] %v1170
    %1187 = vst [vmem:[#allocation9 + $0x28] sm:$0xff] %v1171
    %1188 = vst [vmem:[#allocation9 + $0x30] sm:$0xff] %v1172
    %1189 = vst [vmem:[#allocation9 + $0x38] sm:$0xff] %v1173
    %1190 = vst [vmem:[#allocation9 + $0x40] sm:$0xff] %v1174
    %1191 = vst [vmem:[#allocation9 + $0x48] sm:$0xff] %v1175
    %1192 = vst [vmem:[#allocation9 + $0x50] sm:$0xff] %v1176
    %1193 = vst [vmem:[#allocation9 + $0x58] sm:$0xff] %v1177
    %1194 = vst [vmem:[#allocation9 + $0x60] sm:$0xff] %v1178
    %1195 = vst [vmem:[#allocation9 + $0x68] sm:$0xff] %v1179
    %1196 = vst [vmem:[#allocation9 + $0x70] sm:$0xff] %v1180
    %1197 = vst [vmem:[#allocation9 + $0x78] sm:$0xff] %v1181
    // Predicated region
    $region42: #{tpu_custom_call.1} parent=1 // pred_check
      _
    $region43: #{tpu_custom_call.1} parent=1 // pred_check_branch
      %1199 = sbr.rel (0) target = $region45
    $region44: #{tpu_custom_call.1} parent=1 // pred_region
      %s1201 = ssub.s32 2048, 2048
      %1202 = vsyncadd [#allocation5], %s1201
      %s1203 = sshll.u32 [#allocation9], 4
      %s1204 = int_to_ptr.vmem [resolvable:$true] %s1203
      %1209 = dma.vmem_to_hbm [thread:$0]  %s1204, 2048, %s7, [#allocation5], 128, 128, 8
    $region45: #{tpu_custom_call.1} parent=1 // pred_fallthru
      _
    // Predicated region
    $region46: #{tpu_custom_call.1} parent=1 // pred_check
      _
    $region47: #{tpu_custom_call.1} parent=1 // pred_check_branch
      %1211 = sbr.rel (0) target = $region49
    $region48: #{tpu_custom_call.1} parent=1 // pred_region
      %1212 = dma.done [#allocation5], 2048
    $region49: #{tpu_custom_call.1} parent=1 // pred_fallthru
      _
    %1213 = vsyncpa [#allocation4], 1
    %1214 = vsyncpa [#allocation7], 1
    %1215 = vsyncpa [#allocation5], 1

</llo_original>
